<compile_context>
chip_gen: v6e
topology: v6e:2x2x1
jax: 0.10.0
libtpu: 0.0.40
codegen_flags: <defaults>
</compile_context>

<pallas_src>
import functools

import jax
import jax.numpy as jnp
from jax.experimental import pallas as pl
from jax.experimental.pallas import tpu as pltpu


# ---------------------------------------------------------------------------
# Fused kernel: ChebConv1 + ReLU -> ChebConv2 + ReLU -> endpoint gather ->
# Linear(2H -> out_dim) -> log_softmax.  Everything stays in VMEM.
# ---------------------------------------------------------------------------
def cheb_link_kernel(idx_ref, l_ref, x_ref, w1_ref, b1_ref, w2_ref, b2_ref,
                     wl_ref, bl_ref, o_ref, z1_ref, z2_ref, h_ref, g_ref,
                     *, K, f_pad, hp, out_dim, n_queries):
    f32 = jnp.float32
    bf16 = jnp.bfloat16

    L = l_ref[...]                                     # [Np, Np] bf16

    def cheb_basis(t0_bf, t0_f, z_ref, F):
        """Write [T_0 | T_1 | ... | T_{K-1}] into z_ref as bf16 slabs of width F."""
        z_ref[:, pl.ds(0, F)] = t0_bf
        if K == 1:
            return
        t_prev_f = t0_f                                # f32 recursion carry
        t_cur_f = jnp.dot(L, t0_bf, preferred_element_type=f32)
        t_cur_bf = t_cur_f.astype(bf16)
        z_ref[:, pl.ds(F, F)] = t_cur_bf
        for k in range(2, K):
            # T_k = 2 L T_{k-1} - T_{k-2}.  The factor 2 is applied to the
            # [N,F] f32 accumulator (exact, power of two) instead of
            # materializing 2*L -- saves a full [N,N] bf16 copy + f32 temp.
            t_new_f = 2.0 * jnp.dot(L, t_cur_bf, preferred_element_type=f32) - t_prev_f
            t_new_bf = t_new_f.astype(bf16)
            z_ref[:, pl.ds(k * F, F)] = t_new_bf
            t_prev_f, t_cur_f, t_cur_bf = t_cur_f, t_new_f, t_new_bf

    # --- ChebConv 1 + ReLU ---------------------------------------------------
    x_bf = x_ref[...]                                  # [Np, f_pad] bf16
    cheb_basis(x_bf, x_bf.astype(f32), z1_ref, f_pad)
    h1 = jnp.dot(z1_ref[...], w1_ref[...], preferred_element_type=f32) + b1_ref[...]
    h1 = jnp.maximum(h1, 0.0)                          # [Np, hp] f32

    # --- ChebConv 2 + ReLU ---------------------------------------------------
    cheb_basis(h1.astype(bf16), h1, z2_ref, hp)
    h2 = jnp.dot(z2_ref[...], w2_ref[...], preferred_element_type=f32) + b2_ref[...]
    h_ref[...] = jnp.maximum(h2, 0.0)                  # node embeddings, f32

    # --- endpoint gather: dynamic row slices out of VMEM (no one-hot matmuls) -
    g_ref[...] = jnp.zeros_like(g_ref)                 # zero the padded query rows
    for e in range(n_queries):                         # E is small and static
        il = idx_ref[e, 0]
        ir = idx_ref[e, 1]
        g_ref[pl.ds(e, 1), pl.ds(0, hp)] = h_ref[pl.ds(il, 1), :]
        g_ref[pl.ds(e, 1), pl.ds(hp, hp)] = h_ref[pl.ds(ir, 1), :]

    # --- linear head: single 2*hp-deep contraction ---------------------------
    logits = (jnp.dot(g_ref[...].astype(bf16), wl_ref[...],
                      preferred_element_type=f32) + bl_ref[...])   # [Ep, op] f32

    # --- log_softmax over the real out_dim columns only ----------------------
    col = jax.lax.broadcasted_iota(jnp.int32, logits.shape, 1)
    logits = jnp.where(col < out_dim, logits, -1e30)   # mask padded lanes (f32-safe)
    m = jnp.max(logits, axis=-1, keepdims=True)
    shifted = logits - m
    lse = jnp.log(jnp.sum(jnp.exp(shifted), axis=-1, keepdims=True))
    o_ref[...] = (shifted - lse).astype(o_ref.dtype)


# ---------------------------------------------------------------------------
# Glue: dense scaled Laplacian, lane-dense padding, SMEM index table, call.
# ---------------------------------------------------------------------------
def _round_up(v, m):
    return (v + m - 1) // m * m


def _pad_last(a, to):
    pad = to - a.shape[-1]
    if pad <= 0:
        return a
    widths = [(0, 0)] * (a.ndim - 1) + [(0, pad)]
    return jnp.pad(a, widths)


def build_l_hat(edge_index, num_nodes):
    # PyG ChebConv (sym norm; default lambda_max evaluates to 2.0; no input
    # self-loops):  L_hat = 2/lambda_max * (I - D^-1/2 A D^-1/2) - I
    #                     = -D^-1/2 A D^-1/2
    src, dst = edge_index[0], edge_index[1]
    A = jnp.zeros((num_nodes, num_nodes), jnp.float32).at[dst, src].add(1.0)
    deg = jnp.sum(A, axis=1)
    dinv = jnp.where(deg > 0, 1.0 / jnp.sqrt(deg), 0.0)
    return -(dinv[:, None] * A * dinv[None, :])


def cheb_link_forward(params, x, edge_index, index):
    N, f_in = x.shape
    K, _, h_dim = params["w1"].shape
    out_dim = params["wl"].shape[-1]
    E = index.shape[0]

    bf16 = jnp.bfloat16
    f_pad = _round_up(f_in, 128)      # lane-dense input feature width
    hp = _round_up(h_dim, 128)        # lane-dense hidden width
    op = _round_up(out_dim, 128)      # lane-dense head output width
    n_pad = _round_up(N, 8)
    e_pad = _round_up(E, 8)

    # Dense scaled Laplacian; zero-padded nodes have zero rows/cols -> inert.
    l_hat = build_l_hat(edge_index, N)
    l_hat = jnp.pad(l_hat, ((0, n_pad - N), (0, n_pad - N))).astype(bf16)
    x_p = jnp.pad(x, ((0, n_pad - N), (0, f_pad - f_in))).astype(bf16)

    # Lane-pad weights/biases; fold the Chebyshev order into the contraction axis.
    w1 = jnp.pad(params["w1"], ((0, 0), (0, f_pad - f_in), (0, hp - h_dim)))
    w1 = w1.reshape(K * f_pad, hp).astype(bf16)
    b1 = _pad_last(params["b1"].reshape(1, -1), hp)
    w2 = jnp.pad(params["w2"], ((0, 0), (0, hp - h_dim), (0, hp - h_dim)))
    w2 = w2.reshape(K * hp, hp).astype(bf16)
    b2 = _pad_last(params["b2"].reshape(1, -1), hp)
    wl = params["wl"]                                  # [2*h_dim, out_dim]
    wl_p = jnp.concatenate(
        [jnp.pad(wl[:h_dim], ((0, hp - h_dim), (0, op - out_dim))),
         jnp.pad(wl[h_dim:], ((0, hp - h_dim), (0, op - out_dim)))],
        axis=0).astype(bf16)                           # [2*hp, op]
    bl = _pad_last(params["bl"].reshape(1, -1), op)
    idx_p = jnp.pad(index.astype(jnp.int32), ((0, e_pad - E), (0, 0)))

    # Explicit VMEM budget (default scoped limit is only 16/32 MiB on v5e/v6e,
    # far below physical); cap at 64 MiB (v7x per-core physical).
    input_bytes = ((l_hat.size + x_p.size + w1.size + w2.size + wl_p.size) * 2
                   + (b1.size + b2.size + bl.size) * 4)
    out_bytes = e_pad * op * 4
    scratch_bytes = ((n_pad * K * f_pad + n_pad * K * hp) * 2
                     + (n_pad * hp + e_pad * 2 * hp) * 4)
    vmem_limit = 2 * (input_bytes + out_bytes) + scratch_bytes + (4 << 20)
    vmem_limit = max(16 << 20, min(64 << 20, int(vmem_limit)))

    flops = 2 * ((K - 1) * n_pad * n_pad * f_pad + n_pad * K * f_pad * hp
                 + (K - 1) * n_pad * n_pad * hp + n_pad * K * hp * hp
                 + e_pad * 2 * hp * op)
    bytes_accessed = int(input_bytes + 4 * idx_p.size + out_bytes)

    vmem = pl.BlockSpec(memory_space=pltpu.MemorySpace.VMEM)
    smem = pl.BlockSpec(memory_space=pltpu.MemorySpace.SMEM)

    out = pl.pallas_call(
        functools.partial(cheb_link_kernel, K=K, f_pad=f_pad, hp=hp,
                          out_dim=out_dim, n_queries=E),
        out_shape=jax.ShapeDtypeStruct((e_pad, op), jnp.float32),
        in_specs=[smem] + [vmem] * 8,
        out_specs=vmem,
        scratch_shapes=[
            pltpu.VMEM((n_pad, K * f_pad), bf16),        # layer-1 Chebyshev basis
            pltpu.VMEM((n_pad, K * hp), bf16),           # layer-2 Chebyshev basis
            pltpu.VMEM((n_pad, hp), jnp.float32),        # layer-2 node embeddings
            pltpu.VMEM((e_pad, 2 * hp), jnp.float32),    # gathered endpoint pairs
        ],
        compiler_params=pltpu.CompilerParams(vmem_limit_bytes=vmem_limit),
        cost_estimate=pl.CostEstimate(flops=flops,
                                      transcendentals=e_pad * (op + 1),
                                      bytes_accessed=bytes_accessed),
    )(idx_p, l_hat, x_p, w1, b1, w2, b2, wl_p, bl)
    # TODO(synk): for large N (v7x: 64 MiB VMEM/core, 2 TCs) tile L_hat over a
    # row grid with dimension_semantics=("parallel",) and keep the full previous
    # Chebyshev order in VMEM scratch, so the dominant 2*N^2-byte L DMA pipelines
    # behind MXU work and both TensorCores are used; the whole-array-resident
    # path here is sized for small graphs.
    # TODO(synk): dropout (module default dropout=False / eval mode) is a no-op here.
    return out[:E, :out_dim]


# ---------------------------------------------------------------------------
# Pure-JAX f32 reference (mirrors the PyTorch module) for a tolerance check.
# ---------------------------------------------------------------------------
def cheb_link_reference(params, x, edge_index, index):
    N = x.shape[0]
    L = build_l_hat(edge_index, N)

    def conv(t, w, b):
        K = w.shape[0]
        Ts = [t]
        if K > 1:
            Ts.append(L @ t)
        for _ in range(2, K):
            Ts.append(2.0 * (L @ Ts[-1]) - Ts[-2])
        out = b.reshape(1, -1)
        for k in range(K):
            out = out + Ts[k] @ w[k]
        return out

    h = jax.nn.relu(conv(x, params["w1"], params["b1"]))
    h = jax.nn.relu(conv(h, params["w2"], params["b2"]))
    g = jnp.concatenate([h[index[:, 0]], h[index[:, 1]]], axis=-1)
    logits = g @ params["wl"] + params["bl"].reshape(1, -1)
    return jax.nn.log_softmax(logits, axis=1)


if __name__ == "__main__":
    # Small, forward-consistent shapes.
    N = 16            # nodes
    input_dim = 8
    filter_num = 32
    out_dim = 4
    K = 3
    E_q = 8           # number of query node pairs

    key = jax.random.PRNGKey(0)
    k1, k2, k3, k4, k5 = jax.random.split(key, 5)

    # Deterministic parameter init; biases zero like PyG/nn.Linear-ish defaults.
    params = {
        "w1": jax.random.normal(k1, (K, input_dim, filter_num), jnp.float32) * 0.1,
        "b1": jnp.zeros((1, filter_num), jnp.float32),
        "w2": jax.random.normal(k2, (K, filter_num, filter_num), jnp.float32) * 0.1,
        "b2": jnp.zeros((1, filter_num), jnp.float32),
        "wl": jax.random.normal(k3, (2 * filter_num, out_dim), jnp.float32) * 0.1,
        "bl": jnp.zeros((1, out_dim), jnp.float32),
    }

    # Node features.
    x = jax.random.normal(k4, (N, input_dim), jnp.float32)

    # Symmetric ring graph edge_index [2, 2N].
    nodes = jnp.arange(N, dtype=jnp.int32)
    nbr = (nodes + 1) % N
    edge_index = jnp.stack(
        [jnp.concatenate([nodes, nbr]), jnp.concatenate([nbr, nodes])], axis=0
    )

    # Query node-pair indices [E_q, 2].
    index = jax.random.randint(k5, (E_q, 2), 0, N, dtype=jnp.int32)

    out = jax.jit(cheb_link_forward)(params, x, edge_index, index)
    jax.block_until_ready(out)

    ref = cheb_link_reference(params, x, edge_index, index)

    assert out.shape == (E_q, out_dim)
    assert bool(jnp.all(jnp.isfinite(out)))
    # log_softmax rows must normalize to 1 in prob space.
    assert bool(jnp.allclose(jnp.sum(jnp.exp(out), axis=1), 1.0, atol=1e-5))
    # bf16 MXU path vs f32 reference (generous tolerance).
    assert bool(jnp.allclose(out, ref, atol=1e-1))
    print("KERNEL_OK")
</pallas_src>

<mosaic_0001>
module attributes {stable_mosaic.version = 11 : i64} {
  func.func private @main(%arg0: i32) attributes {dimension_semantics = [#tpu.dimension_semantics<core_parallel>], iteration_bounds = array<i64: 2>, tpu.core_type = #tpu.core_type<sc_scalar_subcore>, window_params = []} {
    return
  }
}

module attributes {stable_mosaic.version = 11 : i64} {
  func.func private @main(%arg0: i32) attributes {dimension_semantics = [#tpu.dimension_semantics<core_parallel>], iteration_bounds = array<i64: 2>, tpu.core_type = #tpu.core_type<sc_scalar_subcore>, window_params = []} {
    return
  }
}

module attributes {stable_mosaic.version = 11 : i64} {
  func.func @cheb_link_kernel(%arg0: memref<8x2xi32, #tpu.memory_space<smem>>, %arg1: memref<16x16xbf16, #tpu.memory_space<vmem>>, %arg2: memref<16x128xbf16, #tpu.memory_space<vmem>>, %arg3: memref<384x128xbf16, #tpu.memory_space<vmem>>, %arg4: memref<1x128xf32, #tpu.memory_space<vmem>>, %arg5: memref<384x128xbf16, #tpu.memory_space<vmem>>, %arg6: memref<1x128xf32, #tpu.memory_space<vmem>>, %arg7: memref<256x128xbf16, #tpu.memory_space<vmem>>, %arg8: memref<1x128xf32, #tpu.memory_space<vmem>>, %arg9: memref<8x128xf32, #tpu.memory_space<vmem>>, %arg10: memref<16x384xbf16, #tpu.memory_space<vmem>>, %arg11: memref<16x384xbf16, #tpu.memory_space<vmem>>, %arg12: memref<16x128xf32, #tpu.memory_space<vmem>>, %arg13: memref<8x256xf32, #tpu.memory_space<vmem>>) attributes {dimension_semantics = [], scalar_prefetch = 0 : i64, scratch_operands = 4 : i64, tpu.core_type = #tpu.core_type<tc>} {
    %c0 = arith.constant 0 : index
    %c0_0 = arith.constant 0 : index
    %0 = vector.load %arg1[%c0, %c0_0] : memref<16x16xbf16, #tpu.memory_space<vmem>>, vector<16x16xbf16>
    %c0_1 = arith.constant 0 : index
    %c0_2 = arith.constant 0 : index
    %1 = vector.load %arg2[%c0_1, %c0_2] : memref<16x128xbf16, #tpu.memory_space<vmem>>, vector<16x128xbf16>
    %2 = arith.extf %1 : vector<16x128xbf16> to vector<16x128xf32>
    %c0_3 = arith.constant 0 : index
    %c0_4 = arith.constant 0 : index
    %3 = vector.load %arg10[%c0_3, %c0_4] : memref<16x384xbf16, #tpu.memory_space<vmem>>, vector<16x128xbf16>
    tpu.vector_store %arg10[%c0_3, %c0_4], %1 {strides = array<i32>} : memref<16x384xbf16, #tpu.memory_space<vmem>>, vector<16x128xbf16>,
    %cst = arith.constant dense<0.000000e+00> : vector<16x128xf32>
    %4 = tpu.matmul %0, %1, %cst {dimension_numbers = #tpu.dot_dimension_numbers<[1], [0], [0], [1], [0, 0, 1, 1], [], []>} : vector<16x16xbf16>, vector<16x128xbf16>, vector<16x128xf32> -> vector<16x128xf32>
    %5 = arith.truncf %4 : vector<16x128xf32> to vector<16x128xbf16>
    %c0_5 = arith.constant 0 : index
    %c128 = arith.constant 128 : index
    %6 = vector.load %arg10[%c0_5, %c128] : memref<16x384xbf16, #tpu.memory_space<vmem>>, vector<16x128xbf16>
    tpu.vector_store %arg10[%c0_5, %c128], %5 {strides = array<i32>} : memref<16x384xbf16, #tpu.memory_space<vmem>>, vector<16x128xbf16>,
    %cst_6 = arith.constant dense<0.000000e+00> : vector<16x128xf32>
    %7 = tpu.matmul %0, %5, %cst_6 {dimension_numbers = #tpu.dot_dimension_numbers<[1], [0], [0], [1], [0, 0, 1, 1], [], []>} : vector<16x16xbf16>, vector<16x128xbf16>, vector<16x128xf32> -> vector<16x128xf32>
    %cst_7 = arith.constant 2.000000e+00 : f32
    %8 = vector.broadcast %cst_7 : f32 to vector<16x128xf32>
    %9 = arith.mulf %8, %7 : vector<16x128xf32>
    %10 = arith.subf %9, %2 : vector<16x128xf32>
    %11 = arith.truncf %10 : vector<16x128xf32> to vector<16x128xbf16>
    %c0_8 = arith.constant 0 : index
    %c256 = arith.constant 256 : index
    %12 = vector.load %arg10[%c0_8, %c256] : memref<16x384xbf16, #tpu.memory_space<vmem>>, vector<16x128xbf16>
    tpu.vector_store %arg10[%c0_8, %c256], %11 {strides = array<i32>} : memref<16x384xbf16, #tpu.memory_space<vmem>>, vector<16x128xbf16>,
    %c0_9 = arith.constant 0 : index
    %c0_10 = arith.constant 0 : index
    %13 = vector.load %arg10[%c0_9, %c0_10] : memref<16x384xbf16, #tpu.memory_space<vmem>>, vector<16x384xbf16>
    %c0_11 = arith.constant 0 : index
    %c0_12 = arith.constant 0 : index
    %14 = vector.load %arg3[%c0_11, %c0_12] : memref<384x128xbf16, #tpu.memory_space<vmem>>, vector<384x128xbf16>
    %cst_13 = arith.constant dense<0.000000e+00> : vector<16x128xf32>
    %15 = tpu.matmul %13, %14, %cst_13 {dimension_numbers = #tpu.dot_dimension_numbers<[1], [0], [0], [1], [0, 0, 1, 1], [], []>} : vector<16x384xbf16>, vector<384x128xbf16>, vector<16x128xf32> -> vector<16x128xf32>
    %c0_14 = arith.constant 0 : index
    %c0_15 = arith.constant 0 : index
    %16 = vector.load %arg4[%c0_14, %c0_15] : memref<1x128xf32, #tpu.memory_space<vmem>>, vector<1x128xf32>
    %17 = vector.broadcast %16 : vector<1x128xf32> to vector<16x128xf32>
    %18 = arith.addf %15, %17 : vector<16x128xf32>
    %cst_16 = arith.constant 0.000000e+00 : f32
    %19 = vector.broadcast %cst_16 : f32 to vector<16x128xf32>
    %20 = arith.maximumf %18, %19 : vector<16x128xf32>
    %21 = arith.truncf %20 : vector<16x128xf32> to vector<16x128xbf16>
    %c0_17 = arith.constant 0 : index
    %c0_18 = arith.constant 0 : index
    %22 = vector.load %arg11[%c0_17, %c0_18] : memref<16x384xbf16, #tpu.memory_space<vmem>>, vector<16x128xbf16>
    tpu.vector_store %arg11[%c0_17, %c0_18], %21 {strides = array<i32>} : memref<16x384xbf16, #tpu.memory_space<vmem>>, vector<16x128xbf16>,
    %cst_19 = arith.constant dense<0.000000e+00> : vector<16x128xf32>
    %23 = tpu.matmul %0, %21, %cst_19 {dimension_numbers = #tpu.dot_dimension_numbers<[1], [0], [0], [1], [0, 0, 1, 1], [], []>} : vector<16x16xbf16>, vector<16x128xbf16>, vector<16x128xf32> -> vector<16x128xf32>
    %24 = arith.truncf %23 : vector<16x128xf32> to vector<16x128xbf16>
    %c0_20 = arith.constant 0 : index
    %c128_21 = arith.constant 128 : index
    %25 = vector.load %arg11[%c0_20, %c128_21] : memref<16x384xbf16, #tpu.memory_space<vmem>>, vector<16x128xbf16>
    tpu.vector_store %arg11[%c0_20, %c128_21], %24 {strides = array<i32>} : memref<16x384xbf16, #tpu.memory_space<vmem>>, vector<16x128xbf16>,
    %cst_22 = arith.constant dense<0.000000e+00> : vector<16x128xf32>
    %26 = tpu.matmul %0, %24, %cst_22 {dimension_numbers = #tpu.dot_dimension_numbers<[1], [0], [0], [1], [0, 0, 1, 1], [], []>} : vector<16x16xbf16>, vector<16x128xbf16>, vector<16x128xf32> -> vector<16x128xf32>
    %cst_23 = arith.constant 2.000000e+00 : f32
    %27 = vector.broadcast %cst_23 : f32 to vector<16x128xf32>
    %28 = arith.mulf %27, %26 : vector<16x128xf32>
    %29 = arith.subf %28, %20 : vector<16x128xf32>
    %30 = arith.truncf %29 : vector<16x128xf32> to vector<16x128xbf16>
    %c0_24 = arith.constant 0 : index
    %c256_25 = arith.constant 256 : index
    %31 = vector.load %arg11[%c0_24, %c256_25] : memref<16x384xbf16, #tpu.memory_space<vmem>>, vector<16x128xbf16>
    tpu.vector_store %arg11[%c0_24, %c256_25], %30 {strides = array<i32>} : memref<16x384xbf16, #tpu.memory_space<vmem>>, vector<16x128xbf16>,
    %c0_26 = arith.constant 0 : index
    %c0_27 = arith.constant 0 : index
    %32 = vector.load %arg11[%c0_26, %c0_27] : memref<16x384xbf16, #tpu.memory_space<vmem>>, vector<16x384xbf16>
    %c0_28 = arith.constant 0 : index
    %c0_29 = arith.constant 0 : index
    %33 = vector.load %arg5[%c0_28, %c0_29] : memref<384x128xbf16, #tpu.memory_space<vmem>>, vector<384x128xbf16>
    %cst_30 = arith.constant dense<0.000000e+00> : vector<16x128xf32>
    %34 = tpu.matmul %32, %33, %cst_30 {dimension_numbers = #tpu.dot_dimension_numbers<[1], [0], [0], [1], [0, 0, 1, 1], [], []>} : vector<16x384xbf16>, vector<384x128xbf16>, vector<16x128xf32> -> vector<16x128xf32>
    %c0_31 = arith.constant 0 : index
    %c0_32 = arith.constant 0 : index
    %35 = vector.load %arg6[%c0_31, %c0_32] : memref<1x128xf32, #tpu.memory_space<vmem>>, vector<1x128xf32>
    %36 = vector.broadcast %35 : vector<1x128xf32> to vector<16x128xf32>
    %37 = arith.addf %34, %36 : vector<16x128xf32>
    %cst_33 = arith.constant 0.000000e+00 : f32
    %38 = vector.broadcast %cst_33 : f32 to vector<16x128xf32>
    %39 = arith.maximumf %37, %38 : vector<16x128xf32>
    %c0_34 = arith.constant 0 : index
    %c0_35 = arith.constant 0 : index
    %40 = vector.load %arg12[%c0_34, %c0_35] : memref<16x128xf32, #tpu.memory_space<vmem>>, vector<16x128xf32>
    tpu.vector_store %arg12[%c0_34, %c0_35], %39 {strides = array<i32>} : memref<16x128xf32, #tpu.memory_space<vmem>>, vector<16x128xf32>,
    %cst_36 = arith.constant 0.000000e+00 : f32
    %41 = vector.broadcast %cst_36 : f32 to vector<8x256xf32>
    %c0_37 = arith.constant 0 : index
    %c0_38 = arith.constant 0 : index
    %42 = vector.load %arg13[%c0_37, %c0_38] : memref<8x256xf32, #tpu.memory_space<vmem>>, vector<8x256xf32>
    tpu.vector_store %arg13[%c0_37, %c0_38], %41 {strides = array<i32>} : memref<8x256xf32, #tpu.memory_space<vmem>>, vector<8x256xf32>,
    %c0_39 = arith.constant 0 : index
    %c0_40 = arith.constant 0 : index
    %43 = memref.load %arg0[%c0_39, %c0_40] : memref<8x2xi32, #tpu.memory_space<smem>>
    %c0_41 = arith.constant 0 : index
    %c1 = arith.constant 1 : index
    %44 = memref.load %arg0[%c0_41, %c1] : memref<8x2xi32, #tpu.memory_space<smem>>
    %45 = arith.index_cast %43 : i32 to index
    %c0_42 = arith.constant 0 : index
    %46 = vector.load %arg12[%45, %c0_42] : memref<16x128xf32, #tpu.memory_space<vmem>>, vector<1x128xf32>
    %c0_43 = arith.constant 0 : index
    %c0_44 = arith.constant 0 : index
    %47 = vector.load %arg13[%c0_43, %c0_44] : memref<8x256xf32, #tpu.memory_space<vmem>>, vector<1x128xf32>
    tpu.vector_store %arg13[%c0_43, %c0_44], %46 {strides = array<i32>} : memref<8x256xf32, #tpu.memory_space<vmem>>, vector<1x128xf32>,
    %48 = arith.index_cast %44 : i32 to index
    %c0_45 = arith.constant 0 : index
    %49 = vector.load %arg12[%48, %c0_45] : memref<16x128xf32, #tpu.memory_space<vmem>>, vector<1x128xf32>
    %c0_46 = arith.constant 0 : index
    %c128_47 = arith.constant 128 : index
    %50 = vector.load %arg13[%c0_46, %c128_47] : memref<8x256xf32, #tpu.memory_space<vmem>>, vector<1x128xf32>
    tpu.vector_store %arg13[%c0_46, %c128_47], %49 {strides = array<i32>} : memref<8x256xf32, #tpu.memory_space<vmem>>, vector<1x128xf32>,
    %c1_48 = arith.constant 1 : index
    %c0_49 = arith.constant 0 : index
    %51 = memref.load %arg0[%c1_48, %c0_49] : memref<8x2xi32, #tpu.memory_space<smem>>
    %c1_50 = arith.constant 1 : index
    %c1_51 = arith.constant 1 : index
    %52 = memref.load %arg0[%c1_50, %c1_51] : memref<8x2xi32, #tpu.memory_space<smem>>
    %53 = arith.index_cast %51 : i32 to index
    %c0_52 = arith.constant 0 : index
    %54 = vector.load %arg12[%53, %c0_52] : memref<16x128xf32, #tpu.memory_space<vmem>>, vector<1x128xf32>
    %c1_53 = arith.constant 1 : index
    %c0_54 = arith.constant 0 : index
    %55 = vector.load %arg13[%c1_53, %c0_54] : memref<8x256xf32, #tpu.memory_space<vmem>>, vector<1x128xf32>
    tpu.vector_store %arg13[%c1_53, %c0_54], %54 {strides = array<i32>} : memref<8x256xf32, #tpu.memory_space<vmem>>, vector<1x128xf32>,
    %56 = arith.index_cast %52 : i32 to index
    %c0_55 = arith.constant 0 : index
    %57 = vector.load %arg12[%56, %c0_55] : memref<16x128xf32, #tpu.memory_space<vmem>>, vector<1x128xf32>
    %c1_56 = arith.constant 1 : index
    %c128_57 = arith.constant 128 : index
    %58 = vector.load %arg13[%c1_56, %c128_57] : memref<8x256xf32, #tpu.memory_space<vmem>>, vector<1x128xf32>
    tpu.vector_store %arg13[%c1_56, %c128_57], %57 {strides = array<i32>} : memref<8x256xf32, #tpu.memory_space<vmem>>, vector<1x128xf32>,
    %c2 = arith.constant 2 : index
    %c0_58 = arith.constant 0 : index
    %59 = memref.load %arg0[%c2, %c0_58] : memref<8x2xi32, #tpu.memory_space<smem>>
    %c2_59 = arith.constant 2 : index
    %c1_60 = arith.constant 1 : index
    %60 = memref.load %arg0[%c2_59, %c1_60] : memref<8x2xi32, #tpu.memory_space<smem>>
    %61 = arith.index_cast %59 : i32 to index
    %c0_61 = arith.constant 0 : index
    %62 = vector.load %arg12[%61, %c0_61] : memref<16x128xf32, #tpu.memory_space<vmem>>, vector<1x128xf32>
    %c2_62 = arith.constant 2 : index
    %c0_63 = arith.constant 0 : index
    %63 = vector.load %arg13[%c2_62, %c0_63] : memref<8x256xf32, #tpu.memory_space<vmem>>, vector<1x128xf32>
    tpu.vector_store %arg13[%c2_62, %c0_63], %62 {strides = array<i32>} : memref<8x256xf32, #tpu.memory_space<vmem>>, vector<1x128xf32>,
    %64 = arith.index_cast %60 : i32 to index
    %c0_64 = arith.constant 0 : index
    %65 = vector.load %arg12[%64, %c0_64] : memref<16x128xf32, #tpu.memory_space<vmem>>, vector<1x128xf32>
    %c2_65 = arith.constant 2 : index
    %c128_66 = arith.constant 128 : index
    %66 = vector.load %arg13[%c2_65, %c128_66] : memref<8x256xf32, #tpu.memory_space<vmem>>, vector<1x128xf32>
    tpu.vector_store %arg13[%c2_65, %c128_66], %65 {strides = array<i32>} : memref<8x256xf32, #tpu.memory_space<vmem>>, vector<1x128xf32>,
    %c3 = arith.constant 3 : index
    %c0_67 = arith.constant 0 : index
    %67 = memref.load %arg0[%c3, %c0_67] : memref<8x2xi32, #tpu.memory_space<smem>>
    %c3_68 = arith.constant 3 : index
    %c1_69 = arith.constant 1 : index
    %68 = memref.load %arg0[%c3_68, %c1_69] : memref<8x2xi32, #tpu.memory_space<smem>>
    %69 = arith.index_cast %67 : i32 to index
    %c0_70 = arith.constant 0 : index
    %70 = vector.load %arg12[%69, %c0_70] : memref<16x128xf32, #tpu.memory_space<vmem>>, vector<1x128xf32>
    %c3_71 = arith.constant 3 : index
    %c0_72 = arith.constant 0 : index
    %71 = vector.load %arg13[%c3_71, %c0_72] : memref<8x256xf32, #tpu.memory_space<vmem>>, vector<1x128xf32>
    tpu.vector_store %arg13[%c3_71, %c0_72], %70 {strides = array<i32>} : memref<8x256xf32, #tpu.memory_space<vmem>>, vector<1x128xf32>,
    %72 = arith.index_cast %68 : i32 to index
    %c0_73 = arith.constant 0 : index
    %73 = vector.load %arg12[%72, %c0_73] : memref<16x128xf32, #tpu.memory_space<vmem>>, vector<1x128xf32>
    %c3_74 = arith.constant 3 : index
    %c128_75 = arith.constant 128 : index
    %74 = vector.load %arg13[%c3_74, %c128_75] : memref<8x256xf32, #tpu.memory_space<vmem>>, vector<1x128xf32>
    tpu.vector_store %arg13[%c3_74, %c128_75], %73 {strides = array<i32>} : memref<8x256xf32, #tpu.memory_space<vmem>>, vector<1x128xf32>,
    %c4 = arith.constant 4 : index
    %c0_76 = arith.constant 0 : index
    %75 = memref.load %arg0[%c4, %c0_76] : memref<8x2xi32, #tpu.memory_space<smem>>
    %c4_77 = arith.constant 4 : index
    %c1_78 = arith.constant 1 : index
    %76 = memref.load %arg0[%c4_77, %c1_78] : memref<8x2xi32, #tpu.memory_space<smem>>
    %77 = arith.index_cast %75 : i32 to index
    %c0_79 = arith.constant 0 : index
    %78 = vector.load %arg12[%77, %c0_79] : memref<16x128xf32, #tpu.memory_space<vmem>>, vector<1x128xf32>
    %c4_80 = arith.constant 4 : index
    %c0_81 = arith.constant 0 : index
    %79 = vector.load %arg13[%c4_80, %c0_81] : memref<8x256xf32, #tpu.memory_space<vmem>>, vector<1x128xf32>
    tpu.vector_store %arg13[%c4_80, %c0_81], %78 {strides = array<i32>} : memref<8x256xf32, #tpu.memory_space<vmem>>, vector<1x128xf32>,
    %80 = arith.index_cast %76 : i32 to index
    %c0_82 = arith.constant 0 : index
    %81 = vector.load %arg12[%80, %c0_82] : memref<16x128xf32, #tpu.memory_space<vmem>>, vector<1x128xf32>
    %c4_83 = arith.constant 4 : index
    %c128_84 = arith.constant 128 : index
    %82 = vector.load %arg13[%c4_83, %c128_84] : memref<8x256xf32, #tpu.memory_space<vmem>>, vector<1x128xf32>
    tpu.vector_store %arg13[%c4_83, %c128_84], %81 {strides = array<i32>} : memref<8x256xf32, #tpu.memory_space<vmem>>, vector<1x128xf32>,
    %c5 = arith.constant 5 : index
    %c0_85 = arith.constant 0 : index
    %83 = memref.load %arg0[%c5, %c0_85] : memref<8x2xi32, #tpu.memory_space<smem>>
    %c5_86 = arith.constant 5 : index
    %c1_87 = arith.constant 1 : index
    %84 = memref.load %arg0[%c5_86, %c1_87] : memref<8x2xi32, #tpu.memory_space<smem>>
    %85 = arith.index_cast %83 : i32 to index
    %c0_88 = arith.constant 0 : index
    %86 = vector.load %arg12[%85, %c0_88] : memref<16x128xf32, #tpu.memory_space<vmem>>, vector<1x128xf32>
    %c5_89 = arith.constant 5 : index
    %c0_90 = arith.constant 0 : index
    %87 = vector.load %arg13[%c5_89, %c0_90] : memref<8x256xf32, #tpu.memory_space<vmem>>, vector<1x128xf32>
    tpu.vector_store %arg13[%c5_89, %c0_90], %86 {strides = array<i32>} : memref<8x256xf32, #tpu.memory_space<vmem>>, vector<1x128xf32>,
    %88 = arith.index_cast %84 : i32 to index
    %c0_91 = arith.constant 0 : index
    %89 = vector.load %arg12[%88, %c0_91] : memref<16x128xf32, #tpu.memory_space<vmem>>, vector<1x128xf32>
    %c5_92 = arith.constant 5 : index
    %c128_93 = arith.constant 128 : index
    %90 = vector.load %arg13[%c5_92, %c128_93] : memref<8x256xf32, #tpu.memory_space<vmem>>, vector<1x128xf32>
    tpu.vector_store %arg13[%c5_92, %c128_93], %89 {strides = array<i32>} : memref<8x256xf32, #tpu.memory_space<vmem>>, vector<1x128xf32>,
    %c6 = arith.constant 6 : index
    %c0_94 = arith.constant 0 : index
    %91 = memref.load %arg0[%c6, %c0_94] : memref<8x2xi32, #tpu.memory_space<smem>>
    %c6_95 = arith.constant 6 : index
    %c1_96 = arith.constant 1 : index
    %92 = memref.load %arg0[%c6_95, %c1_96] : memref<8x2xi32, #tpu.memory_space<smem>>
    %93 = arith.index_cast %91 : i32 to index
    %c0_97 = arith.constant 0 : index
    %94 = vector.load %arg12[%93, %c0_97] : memref<16x128xf32, #tpu.memory_space<vmem>>, vector<1x128xf32>
    %c6_98 = arith.constant 6 : index
    %c0_99 = arith.constant 0 : index
    %95 = vector.load %arg13[%c6_98, %c0_99] : memref<8x256xf32, #tpu.memory_space<vmem>>, vector<1x128xf32>
    tpu.vector_store %arg13[%c6_98, %c0_99], %94 {strides = array<i32>} : memref<8x256xf32, #tpu.memory_space<vmem>>, vector<1x128xf32>,
    %96 = arith.index_cast %92 : i32 to index
    %c0_100 = arith.constant 0 : index
    %97 = vector.load %arg12[%96, %c0_100] : memref<16x128xf32, #tpu.memory_space<vmem>>, vector<1x128xf32>
    %c6_101 = arith.constant 6 : index
    %c128_102 = arith.constant 128 : index
    %98 = vector.load %arg13[%c6_101, %c128_102] : memref<8x256xf32, #tpu.memory_space<vmem>>, vector<1x128xf32>
    tpu.vector_store %arg13[%c6_101, %c128_102], %97 {strides = array<i32>} : memref<8x256xf32, #tpu.memory_space<vmem>>, vector<1x128xf32>,
    %c7 = arith.constant 7 : index
    %c0_103 = arith.constant 0 : index
    %99 = memref.load %arg0[%c7, %c0_103] : memref<8x2xi32, #tpu.memory_space<smem>>
    %c7_104 = arith.constant 7 : index
    %c1_105 = arith.constant 1 : index
    %100 = memref.load %arg0[%c7_104, %c1_105] : memref<8x2xi32, #tpu.memory_space<smem>>
    %101 = arith.index_cast %99 : i32 to index
    %c0_106 = arith.constant 0 : index
    %102 = vector.load %arg12[%101, %c0_106] : memref<16x128xf32, #tpu.memory_space<vmem>>, vector<1x128xf32>
    %c7_107 = arith.constant 7 : index
    %c0_108 = arith.constant 0 : index
    %103 = vector.load %arg13[%c7_107, %c0_108] : memref<8x256xf32, #tpu.memory_space<vmem>>, vector<1x128xf32>
    tpu.vector_store %arg13[%c7_107, %c0_108], %102 {strides = array<i32>} : memref<8x256xf32, #tpu.memory_space<vmem>>, vector<1x128xf32>,
    %104 = arith.index_cast %100 : i32 to index
    %c0_109 = arith.constant 0 : index
    %105 = vector.load %arg12[%104, %c0_109] : memref<16x128xf32, #tpu.memory_space<vmem>>, vector<1x128xf32>
    %c7_110 = arith.constant 7 : index
    %c128_111 = arith.constant 128 : index
    %106 = vector.load %arg13[%c7_110, %c128_111] : memref<8x256xf32, #tpu.memory_space<vmem>>, vector<1x128xf32>
    tpu.vector_store %arg13[%c7_110, %c128_111], %105 {strides = array<i32>} : memref<8x256xf32, #tpu.memory_space<vmem>>, vector<1x128xf32>,
    %c0_112 = arith.constant 0 : index
    %c0_113 = arith.constant 0 : index
    %107 = vector.load %arg13[%c0_112, %c0_113] : memref<8x256xf32, #tpu.memory_space<vmem>>, vector<8x256xf32>
    %108 = arith.truncf %107 : vector<8x256xf32> to vector<8x256xbf16>
    %c0_114 = arith.constant 0 : index
    %c0_115 = arith.constant 0 : index
    %109 = vector.load %arg7[%c0_114, %c0_115] : memref<256x128xbf16, #tpu.memory_space<vmem>>, vector<256x128xbf16>
    %cst_116 = arith.constant dense<0.000000e+00> : vector<8x128xf32>
    %110 = tpu.matmul %108, %109, %cst_116 {dimension_numbers = #tpu.dot_dimension_numbers<[1], [0], [0], [1], [0, 0, 1, 1], [], []>} : vector<8x256xbf16>, vector<256x128xbf16>, vector<8x128xf32> -> vector<8x128xf32>
    %c0_117 = arith.constant 0 : index
    %c0_118 = arith.constant 0 : index
    %111 = vector.load %arg8[%c0_117, %c0_118] : memref<1x128xf32, #tpu.memory_space<vmem>>, vector<1x128xf32>
    %112 = vector.broadcast %111 : vector<1x128xf32> to vector<8x128xf32>
    %113 = arith.addf %110, %112 : vector<8x128xf32>
    %114 = tpu.iota {dimensions = array<i32: 1>} : vector<8x128xi32>
    %c4_i32 = arith.constant 4 : i32
    %115 = vector.broadcast %c4_i32 : i32 to vector<8x128xi32>
    %116 = arith.cmpi slt, %114, %115 : vector<8x128xi32>
    %cst_119 = arith.constant -1.000000e+30 : f32
    %117 = vector.broadcast %cst_119 : f32 to vector<8x128xf32>
    %118 = arith.select %116, %113, %117 : vector<8x128xi1>, vector<8x128xf32>
    %cst_120 = arith.constant dense<0xFF800000> : vector<8xf32>
    %119 = vector.multi_reduction <maximumf>, %118, %cst_120 [1] : vector<8x128xf32> to vector<8xf32>
    %120 = vector.shape_cast %119 : vector<8xf32> to vector<8x1xf32>
    %121 = vector.broadcast %120 : vector<8x1xf32> to vector<8x128xf32>
    %122 = arith.subf %118, %121 : vector<8x128xf32>
    %123 = math.exp %122 : vector<8x128xf32>
    %cst_121 = arith.constant dense<0.000000e+00> : vector<8xf32>
    %124 = vector.multi_reduction <add>, %123, %cst_121 [1] : vector<8x128xf32> to vector<8xf32>
    %125 = vector.shape_cast %124 : vector<8xf32> to vector<8x1xf32>
    %126 = math.log %125 : vector<8x1xf32>
    %127 = vector.broadcast %126 : vector<8x1xf32> to vector<8x128xf32>
    %128 = arith.subf %122, %127 : vector<8x128xf32>
    %c0_122 = arith.constant 0 : index
    %c0_123 = arith.constant 0 : index
    %129 = vector.load %arg9[%c0_122, %c0_123] : memref<8x128xf32, #tpu.memory_space<vmem>>, vector<8x128xf32>
    tpu.vector_store %arg9[%c0_122, %c0_123], %128 {strides = array<i32>} : memref<8x128xf32, #tpu.memory_space<vmem>>, vector<8x128xf32>,
    return
  }
}

</mosaic_0001>

<llo_original>
// kernel: cheb_link_forward.1
$region0: #{cheb_link_forward.1}
  #allocation0 [shape = 'u32[]', space=smem, size = 0x4, offset = 0x4, fixed_abs, tag = 'smem constant byte address 0x4 - core index']
  #allocation1 [shape = 'u32[144,128]{1,0:T(1,128)}', space=vmem, size = 0x12000, scoped, tag = 'internal scratch']
  #allocation2 [shape = 'bf16[16,384]{1,0:T(8,128)(2,1)}', space=vmem, size = 0x3000, scoped, tag = 'scratch operand']
  #allocation3 [shape = 'bf16[16,384]{1,0:T(8,128)(2,1)}', space=vmem, size = 0x3000, scoped, tag = 'scratch operand']
  #allocation4 [shape = 'f32[16,128]{1,0:T(8,128)}', space=vmem, size = 0x2000, scoped, tag = 'scratch operand']
  #allocation5 [shape = 'f32[8,256]{1,0:T(8,128)}', space=vmem, size = 0x2000, scoped, tag = 'scratch operand']
  %s0 = inlined_call_operand.vmem [shape: s32[8,2], index: 0, kind: input, shape index: {}]
  %s1 = inlined_call_operand.vmem [shape: bf16[16,16], index: 1, kind: input, shape index: {}]
  %s2 = inlined_call_operand.vmem [shape: bf16[16,128], index: 2, kind: input, shape index: {}]
  %s3 = inlined_call_operand.vmem [shape: bf16[384,128], index: 3, kind: input, shape index: {}]
  %s4 = inlined_call_operand.vmem [shape: f32[1,128], index: 4, kind: input, shape index: {}]
  %s5 = inlined_call_operand.vmem [shape: bf16[384,128], index: 5, kind: input, shape index: {}]
  %s6 = inlined_call_operand.vmem [shape: f32[1,128], index: 6, kind: input, shape index: {}]
  %s7 = inlined_call_operand.vmem [shape: bf16[256,128], index: 7, kind: input, shape index: {}]
  %s8 = inlined_call_operand.vmem [shape: f32[1,128], index: 8, kind: input, shape index: {}]
  %s9 = inlined_call_operand.vmem [shape: f32[8,128], index: 9, kind: output, shape index: {}]
  %s10 = sld [smem:[#allocation0]]
  $region50: #{cheb_link_forward.1} parent=0
    _
  %s12 = ssub.s32 1, %s10
  %s13 = scalar_select 0, %s12, %s10
  $region1: #{cheb_link_forward.1} parent=0
    #allocation6 [shape = 'u8[4096]{0}', space=smem, size = 0x1000, scoped, tag = 'input window, operand 0, single buffered']
    #allocation7 [shape = 's32[1]{0}', space=sflag, size = 0x4, scoped, tag = 'scoped memory for cheb_link_forward.1']
    %14 = vsyncpa [#allocation7], 0
    // Predicated region
    $region2: #{cheb_link_forward.1} parent=1 // pred_check
      _
    $region3: #{cheb_link_forward.1} parent=1 // pred_check_branch
      %16 = sbr.rel (0) target = $region5
    $region4: #{cheb_link_forward.1} parent=1 // pred_region
      %s18 = ssub.s32 128, 128
      %19 = vsyncadd [#allocation7], %s18
      %s21 = sshll.u32 %s0, 4
      %s22 = int_to_ptr.vmem [resolvable:$true] %s21
      %24 = dma.vmem_to_smem %s22, 128, [#allocation6], [#allocation7]
    $region5: #{cheb_link_forward.1} parent=1 // pred_fallthru
      _
    // Predicated region
    $region6: #{cheb_link_forward.1} parent=1 // pred_check
      _
    $region7: #{cheb_link_forward.1} parent=1 // pred_check_branch
      %26 = sbr.rel (0) target = $region9
    $region8: #{cheb_link_forward.1} parent=1 // pred_region
      _
    $region9: #{cheb_link_forward.1} parent=1 // pred_fallthru
      _
    // Predicated region
    $region10: #{cheb_link_forward.1} parent=1 // pred_check
      _
    $region11: #{cheb_link_forward.1} parent=1 // pred_check_branch
      %28 = sbr.rel (0) target = $region13
    $region12: #{cheb_link_forward.1} parent=1 // pred_region
      _
    $region13: #{cheb_link_forward.1} parent=1 // pred_fallthru
      _
    // Predicated region
    $region14: #{cheb_link_forward.1} parent=1 // pred_check
      _
    $region15: #{cheb_link_forward.1} parent=1 // pred_check_branch
      %30 = sbr.rel (0) target = $region17
    $region16: #{cheb_link_forward.1} parent=1 // pred_region
      _
    $region17: #{cheb_link_forward.1} parent=1 // pred_fallthru
      _
    // Predicated region
    $region18: #{cheb_link_forward.1} parent=1 // pred_check
      _
    $region19: #{cheb_link_forward.1} parent=1 // pred_check_branch
      %32 = sbr.rel (0) target = $region21
    $region20: #{cheb_link_forward.1} parent=1 // pred_region
      _
    $region21: #{cheb_link_forward.1} parent=1 // pred_fallthru
      _
    // Predicated region
    $region22: #{cheb_link_forward.1} parent=1 // pred_check
      _
    $region23: #{cheb_link_forward.1} parent=1 // pred_check_branch
      %34 = sbr.rel (0) target = $region25
    $region24: #{cheb_link_forward.1} parent=1 // pred_region
      _
    $region25: #{cheb_link_forward.1} parent=1 // pred_fallthru
      _
    // Predicated region
    $region26: #{cheb_link_forward.1} parent=1 // pred_check
      _
    $region27: #{cheb_link_forward.1} parent=1 // pred_check_branch
      %36 = sbr.rel (0) target = $region29
    $region28: #{cheb_link_forward.1} parent=1 // pred_region
      _
    $region29: #{cheb_link_forward.1} parent=1 // pred_fallthru
      _
    // Predicated region
    $region30: #{cheb_link_forward.1} parent=1 // pred_check
      _
    $region31: #{cheb_link_forward.1} parent=1 // pred_check_branch
      %38 = sbr.rel (0) target = $region33
    $region32: #{cheb_link_forward.1} parent=1 // pred_region
      _
    $region33: #{cheb_link_forward.1} parent=1 // pred_fallthru
      _
    // Predicated region
    $region34: #{cheb_link_forward.1} parent=1 // pred_check
      _
    $region35: #{cheb_link_forward.1} parent=1 // pred_check_branch
      %40 = sbr.rel (0) target = $region37
    $region36: #{cheb_link_forward.1} parent=1 // pred_region
      _
    $region37: #{cheb_link_forward.1} parent=1 // pred_fallthru
      _
    // Predicated region
    $region38: #{cheb_link_forward.1} parent=1 // pred_check
      _
    $region39: #{cheb_link_forward.1} parent=1 // pred_check_branch
      %42 = sbr.rel (0) target = $region41
    $region40: #{cheb_link_forward.1} parent=1 // pred_region
      %43 = dma.done [#allocation7], 128
    $region41: #{cheb_link_forward.1} parent=1 // pred_fallthru
      _
    %44 = sfence
    %v46 = vld [vmem:[%s1] sm:$0xf]
    %v47 = vld [vmem:[%s1 + $0x4] sm:$0xf]
    %v48 = vld [vmem:[%s2] sm:$0xf]
    %v49 = vld [vmem:[%s2 + $0x4] sm:$0xf]
    %v50 = vunpack.c.l.bf16 %v48
    %v51 = vunpack.c.l.bf16 %v49
    %52 = vst [vmem:[#allocation2] sm:$0xf] %v48
    %53 = vst [vmem:[#allocation2 + $0xc] sm:$0xf] %v49
    %v56 = vunpack.c.l.b16 %v46
    %v57 = vunpack.c.l.b16 %v47
    %v58 = vpack.c.b16 %v57, %v56
    %v61 = vunpack.c.l.b16 %v48
    %v62 = vunpack.c.l.b16 %v49
    %v63 = vpack.c.b16 %v62, %v61
    %vm65 = vcmask 130048
    %v67 = vsel %vm65, %v58, 0
    %69 = vmatprep.subr.bf16.mxu0 0
    %70 = vmatpush1.bf16.msra.mxu0 0
    %71 = vmatprep.subr.bf16.mxu0 0
    %72 = vmatpush1.bf16.msra.mxu0 0
    %73 = vmatprep.subr.bf16.mxu0 0
    %74 = vmatpush1.bf16.msra.mxu0 0
    %75 = vmatprep.subr.bf16.mxu0 0
    %76 = vmatpush1.bf16.msra.mxu0 0
    %77 = vmatprep.subr.bf16.mxu0 0
    %78 = vmatpush1.bf16.msra.mxu0 0
    %79 = vmatprep.subr.bf16.mxu0 0
    %80 = vmatpush1.bf16.msra.mxu0 0
    %81 = vmatprep.subr.bf16.mxu0 0
    %82 = vmatpush1.bf16.msra.mxu0 0
    %83 = vmatprep.subr.bf16.mxu0 0
    %84 = vmatpush1.bf16.msra.mxu0 %v63
    %85 = vmatprep.subr.bf16.mxu0 0
    %86 = vmatpush2.bf16.msra.mxu0 0
    %87 = vmatprep.subr.bf16.mxu0 0
    %88 = vmatpush2.bf16.msra.mxu0 0
    %89 = vmatprep.subr.bf16.mxu0 0
    %90 = vmatpush2.bf16.msra.mxu0 0
    %91 = vmatprep.subr.bf16.mxu0 0
    %92 = vmatpush2.bf16.msra.mxu0 0
    %93 = vmatprep.subr.bf16.mxu0 0
    %94 = vmatpush2.bf16.msra.mxu0 0
    %95 = vmatprep.subr.bf16.mxu0 0
    %96 = vmatpush2.bf16.msra.mxu0 0
    %97 = vmatprep.subr.bf16.mxu0 0
    %98 = vmatpush2.bf16.msra.mxu0 0
    %99 = vmatprep.subr.bf16.mxu0 0
    %100 = vmatpush2.bf16.msra.mxu0 0
    %101 = vmatprep.mubr.bf16.mxu0 0
    %102 = vmatmul.mubr.bf16.gmra.mxu0 %v67
    %v103 = vpop.f32.mrf.mxu0
    %v104 = vadd.f32 0.0, %v103
    %v105 = vpop.f32.mrf.mxu0
    %v106 = vpop.f32.mrf.mxu0
    %v107 = vadd.f32 0.0, %v106
    %v108 = vpop.f32.mrf.mxu0
    %109 = vdwg.mxu0
    %v110 = vpack.c.bf16 %v107, %v104
    %v112 = vunpack.c.l.b16 %v110
    %v113 = vunpack.c.h.b16 %v110
    %v114 = vpack.c.b16 %v112, %v112
    %v115 = vpack.c.b16 %v113, %v113
    %118 = vst [vmem:[#allocation2 + $0x4] sm:$0xf] %v114
    %119 = vst [vmem:[#allocation2 + $0x10] sm:$0xf] %v115
    %120 = vmatprep.subr.bf16.mxu0 0
    %121 = vmatpush1.bf16.msra.mxu0 0
    %122 = vmatprep.subr.bf16.mxu0 0
    %123 = vmatpush1.bf16.msra.mxu0 0
    %124 = vmatprep.subr.bf16.mxu0 0
    %125 = vmatpush1.bf16.msra.mxu0 0
    %126 = vmatprep.subr.bf16.mxu0 0
    %127 = vmatpush1.bf16.msra.mxu0 0
    %128 = vmatprep.subr.bf16.mxu0 0
    %129 = vmatpush1.bf16.msra.mxu0 0
    %130 = vmatprep.subr.bf16.mxu0 0
    %131 = vmatpush1.bf16.msra.mxu0 0
    %132 = vmatprep.subr.bf16.mxu0 0
    %133 = vmatpush1.bf16.msra.mxu0 0
    %134 = vmatprep.subr.bf16.mxu0 0
    %135 = vmatpush1.bf16.msra.mxu0 %v110
    %136 = vmatprep.subr.bf16.mxu0 0
    %137 = vmatpush2.bf16.msra.mxu0 0
    %138 = vmatprep.subr.bf16.mxu0 0
    %139 = vmatpush2.bf16.msra.mxu0 0
    %140 = vmatprep.subr.bf16.mxu0 0
    %141 = vmatpush2.bf16.msra.mxu0 0
    %142 = vmatprep.subr.bf16.mxu0 0
    %143 = vmatpush2.bf16.msra.mxu0 0
    %144 = vmatprep.subr.bf16.mxu0 0
    %145 = vmatpush2.bf16.msra.mxu0 0
    %146 = vmatprep.subr.bf16.mxu0 0
    %147 = vmatpush2.bf16.msra.mxu0 0
    %148 = vmatprep.subr.bf16.mxu0 0
    %149 = vmatpush2.bf16.msra.mxu0 0
    %150 = vmatprep.subr.bf16.mxu0 0
    %151 = vmatpush2.bf16.msra.mxu0 0
    %152 = vmatprep.mubr.bf16.mxu0 0
    %153 = vmatmul.mubr.bf16.gmra.mxu0 %v67
    %v154 = vpop.f32.mrf.mxu0
    %v155 = vadd.f32 0.0, %v154
    %v156 = vpop.f32.mrf.mxu0
    %v157 = vpop.f32.mrf.mxu0
    %v158 = vadd.f32 0.0, %v157
    %v159 = vpop.f32.mrf.mxu0
    %160 = vdwg.mxu0
    %v161 = vmul.f32 %v155, 2.0
    %v162 = vmul.f32 %v158, 2.0
    %v163 = vsub.f32 %v161, %v50
    %v164 = vsub.f32 %v162, %v51
    %v165 = vpack.c.bf16 %v164, %v163
    %v167 = vunpack.c.l.b16 %v165
    %v168 = vunpack.c.h.b16 %v165
    %v169 = vpack.c.b16 %v167, %v167
    %v170 = vpack.c.b16 %v168, %v168
    %173 = vst [vmem:[#allocation2 + $0x8] sm:$0xf] %v169
    %174 = vst [vmem:[#allocation2 + $0x14] sm:$0xf] %v170
    %v175 = vld [vmem:[#allocation2] sm:$0xff]
    %v176 = vld [vmem:[#allocation2 + $0x8] sm:$0xf]
    %v177 = vld [vmem:[#allocation2 + $0xc] sm:$0xff]
    %v178 = vld [vmem:[#allocation2 + $0x14] sm:$0xf]
    %v179 = vld [vmem:[%s3] sm:$0xf]
    %v180 = vld [vmem:[%s3 + $0x4] sm:$0xf]
    %v181 = vld [vmem:[%s3 + $0x8] sm:$0xf]
    %v182 = vld [vmem:[%s3 + $0xc] sm:$0xf]
    %v183 = vld [vmem:[%s3 + $0x10] sm:$0xf]
    %v184 = vld [vmem:[%s3 + $0x14] sm:$0xf]
    %v185 = vld [vmem:[%s3 + $0x18] sm:$0xf]
    %v186 = vld [vmem:[%s3 + $0x1c] sm:$0xf]
    %v187 = vld [vmem:[%s3 + $0x20] sm:$0xf]
    %v188 = vld [vmem:[%s3 + $0x24] sm:$0xf]
    %v189 = vld [vmem:[%s3 + $0x28] sm:$0xf]
    %v190 = vld [vmem:[%s3 + $0x2c] sm:$0xf]
    %v191 = vld [vmem:[%s3 + $0x30] sm:$0xf]
    %v192 = vld [vmem:[%s3 + $0x34] sm:$0xf]
    %v193 = vld [vmem:[%s3 + $0x38] sm:$0xf]
    %v194 = vld [vmem:[%s3 + $0x3c] sm:$0xf]
    %v195 = vld [vmem:[%s3 + $0x40] sm:$0xf]
    %v196 = vld [vmem:[%s3 + $0x44] sm:$0xf]
    %v197 = vld [vmem:[%s3 + $0x48] sm:$0xf]
    %v198 = vld [vmem:[%s3 + $0x4c] sm:$0xf]
    %v199 = vld [vmem:[%s3 + $0x50] sm:$0xf]
    %v200 = vld [vmem:[%s3 + $0x54] sm:$0xf]
    %v201 = vld [vmem:[%s3 + $0x58] sm:$0xf]
    %v202 = vld [vmem:[%s3 + $0x5c] sm:$0xf]
    %v203 = vld [vmem:[%s3 + $0x60] sm:$0xf]
    %v204 = vld [vmem:[%s3 + $0x64] sm:$0xf]
    %v205 = vld [vmem:[%s3 + $0x68] sm:$0xf]
    %v206 = vld [vmem:[%s3 + $0x6c] sm:$0xf]
    %v207 = vld [vmem:[%s3 + $0x70] sm:$0xf]
    %v208 = vld [vmem:[%s3 + $0x74] sm:$0xf]
    %v209 = vld [vmem:[%s3 + $0x78] sm:$0xf]
    %v210 = vld [vmem:[%s3 + $0x7c] sm:$0xf]
    %v211 = vld [vmem:[%s3 + $0x80] sm:$0xf]
    %v212 = vld [vmem:[%s3 + $0x84] sm:$0xf]
    %v213 = vld [vmem:[%s3 + $0x88] sm:$0xf]
    %v214 = vld [vmem:[%s3 + $0x8c] sm:$0xf]
    %v215 = vld [vmem:[%s3 + $0x90] sm:$0xf]
    %v216 = vld [vmem:[%s3 + $0x94] sm:$0xf]
    %v217 = vld [vmem:[%s3 + $0x98] sm:$0xf]
    %v218 = vld [vmem:[%s3 + $0x9c] sm:$0xf]
    %v219 = vld [vmem:[%s3 + $0xa0] sm:$0xf]
    %v220 = vld [vmem:[%s3 + $0xa4] sm:$0xf]
    %v221 = vld [vmem:[%s3 + $0xa8] sm:$0xf]
    %v222 = vld [vmem:[%s3 + $0xac] sm:$0xf]
    %v223 = vld [vmem:[%s3 + $0xb0] sm:$0xf]
    %v224 = vld [vmem:[%s3 + $0xb4] sm:$0xf]
    %v225 = vld [vmem:[%s3 + $0xb8] sm:$0xf]
    %v226 = vld [vmem:[%s3 + $0xbc] sm:$0xf]
    %v227 = vld [vmem:[%s4] sm:$0x1]
    %v229 = vlaneseq
    %v230 = vshrl.u32 %v229, 7
    %v231 = vsub.s32 0, %v230
    %v232 = vrot.slane %v227, %v231
    %v238 = vunpack.c.l.b16 %v175
    %v239 = vunpack.c.h.b16 %v175
    %v240 = vunpack.c.l.b16 %v176
    %v241 = vunpack.c.l.b16 %v177
    %v242 = vunpack.c.h.b16 %v177
    %v243 = vunpack.c.l.b16 %v178
    %v244 = vpack.c.b16 %v241, %v238
    %v245 = vpack.c.b16 %v242, %v239
    %v246 = vpack.c.b16 %v243, %v240
    %v298 = vunpack.c.l.b16 %v179
    %v299 = vunpack.c.l.b16 %v180
    %v300 = vunpack.c.l.b16 %v181
    %v301 = vunpack.c.l.b16 %v182
    %v302 = vunpack.c.l.b16 %v183
    %v303 = vunpack.c.l.b16 %v184
    %v304 = vunpack.c.l.b16 %v185
    %v305 = vunpack.c.l.b16 %v186
    %v306 = vunpack.c.l.b16 %v187
    %v307 = vunpack.c.l.b16 %v188
    %v308 = vunpack.c.l.b16 %v189
    %v309 = vunpack.c.l.b16 %v190
    %v310 = vunpack.c.l.b16 %v191
    %v311 = vunpack.c.l.b16 %v192
    %v312 = vunpack.c.l.b16 %v193
    %v313 = vunpack.c.l.b16 %v194
    %v314 = vunpack.c.l.b16 %v195
    %v315 = vunpack.c.l.b16 %v196
    %v316 = vunpack.c.l.b16 %v197
    %v317 = vunpack.c.l.b16 %v198
    %v318 = vunpack.c.l.b16 %v199
    %v319 = vunpack.c.l.b16 %v200
    %v320 = vunpack.c.l.b16 %v201
    %v321 = vunpack.c.l.b16 %v202
    %v322 = vunpack.c.l.b16 %v203
    %v323 = vunpack.c.l.b16 %v204
    %v324 = vunpack.c.l.b16 %v205
    %v325 = vunpack.c.l.b16 %v206
    %v326 = vunpack.c.l.b16 %v207
    %v327 = vunpack.c.l.b16 %v208
    %v328 = vunpack.c.l.b16 %v209
    %v329 = vunpack.c.l.b16 %v210
    %v330 = vunpack.c.l.b16 %v211
    %v331 = vunpack.c.l.b16 %v212
    %v332 = vunpack.c.l.b16 %v213
    %v333 = vunpack.c.l.b16 %v214
    %v334 = vunpack.c.l.b16 %v215
    %v335 = vunpack.c.l.b16 %v216
    %v336 = vunpack.c.l.b16 %v217
    %v337 = vunpack.c.l.b16 %v218
    %v338 = vunpack.c.l.b16 %v219
    %v339 = vunpack.c.l.b16 %v220
    %v340 = vunpack.c.l.b16 %v221
    %v341 = vunpack.c.l.b16 %v222
    %v342 = vunpack.c.l.b16 %v223
    %v343 = vunpack.c.l.b16 %v224
    %v344 = vunpack.c.l.b16 %v225
    %v345 = vunpack.c.l.b16 %v226
    %v346 = vpack.c.b16 %v299, %v298
    %v347 = vpack.c.b16 %v301, %v300
    %v348 = vpack.c.b16 %v303, %v302
    %v349 = vpack.c.b16 %v305, %v304
    %v350 = vpack.c.b16 %v307, %v306
    %v351 = vpack.c.b16 %v309, %v308
    %v352 = vpack.c.b16 %v311, %v310
    %v353 = vpack.c.b16 %v313, %v312
    %v354 = vpack.c.b16 %v315, %v314
    %v355 = vpack.c.b16 %v317, %v316
    %v356 = vpack.c.b16 %v319, %v318
    %v357 = vpack.c.b16 %v321, %v320
    %v358 = vpack.c.b16 %v323, %v322
    %v359 = vpack.c.b16 %v325, %v324
    %v360 = vpack.c.b16 %v327, %v326
    %v361 = vpack.c.b16 %v329, %v328
    %v362 = vpack.c.b16 %v331, %v330
    %v363 = vpack.c.b16 %v333, %v332
    %v364 = vpack.c.b16 %v335, %v334
    %v365 = vpack.c.b16 %v337, %v336
    %v366 = vpack.c.b16 %v339, %v338
    %v367 = vpack.c.b16 %v341, %v340
    %v368 = vpack.c.b16 %v343, %v342
    %v369 = vpack.c.b16 %v345, %v344
    %394 = vmatprep.subr.bf16.mxu0 0
    %395 = vmatpush1.bf16.msra.mxu0 %v353
    %396 = vmatprep.subr.bf16.mxu0 0
    %397 = vmatpush1.bf16.msra.mxu0 %v352
    %398 = vmatprep.subr.bf16.mxu0 0
    %399 = vmatpush1.bf16.msra.mxu0 %v351
    %400 = vmatprep.subr.bf16.mxu0 0
    %401 = vmatpush1.bf16.msra.mxu0 %v350
    %402 = vmatprep.subr.bf16.mxu0 0
    %403 = vmatpush1.bf16.msra.mxu0 %v349
    %404 = vmatprep.subr.bf16.mxu0 0
    %405 = vmatpush1.bf16.msra.mxu0 %v348
    %406 = vmatprep.subr.bf16.mxu0 0
    %407 = vmatpush1.bf16.msra.mxu0 %v347
    %408 = vmatprep.subr.bf16.mxu0 0
    %409 = vmatpush1.bf16.msra.mxu0 %v346
    %410 = vmatprep.subr.bf16.mxu0 0
    %411 = vmatpush2.bf16.msra.mxu0 %v361
    %412 = vmatprep.subr.bf16.mxu0 0
    %413 = vmatpush2.bf16.msra.mxu0 %v360
    %414 = vmatprep.subr.bf16.mxu0 0
    %415 = vmatpush2.bf16.msra.mxu0 %v359
    %416 = vmatprep.subr.bf16.mxu0 0
    %417 = vmatpush2.bf16.msra.mxu0 %v358
    %418 = vmatprep.subr.bf16.mxu0 0
    %419 = vmatpush2.bf16.msra.mxu0 %v357
    %420 = vmatprep.subr.bf16.mxu0 0
    %421 = vmatpush2.bf16.msra.mxu0 %v356
    %422 = vmatprep.subr.bf16.mxu0 0
    %423 = vmatpush2.bf16.msra.mxu0 %v355
    %424 = vmatprep.subr.bf16.mxu0 0
    %425 = vmatpush2.bf16.msra.mxu0 %v354
    %426 = vmatprep.mubr.bf16.mxu0 %v245
    %427 = vmatmul.mubr.bf16.gmra.mxu0 %v244
    %v428 = vpop.f32.mrf.mxu0
    %v429 = vadd.f32 %v232, %v428
    %v430 = vpop.f32.mrf.mxu0
    %v431 = vpop.f32.mrf.mxu0
    %v432 = vadd.f32 %v232, %v431
    %v433 = vpop.f32.mrf.mxu0
    %434 = vdwg.mxu0
    %435 = vmatprep.subr.bf16.mxu0 0
    %436 = vmatpush1.bf16.msra.mxu0 %v369
    %437 = vmatprep.subr.bf16.mxu0 0
    %438 = vmatpush1.bf16.msra.mxu0 %v368
    %439 = vmatprep.subr.bf16.mxu0 0
    %440 = vmatpush1.bf16.msra.mxu0 %v367
    %441 = vmatprep.subr.bf16.mxu0 0
    %442 = vmatpush1.bf16.msra.mxu0 %v366
    %443 = vmatprep.subr.bf16.mxu0 0
    %444 = vmatpush1.bf16.msra.mxu0 %v365
    %445 = vmatprep.subr.bf16.mxu0 0
    %446 = vmatpush1.bf16.msra.mxu0 %v364
    %447 = vmatprep.subr.bf16.mxu0 0
    %448 = vmatpush1.bf16.msra.mxu0 %v363
    %449 = vmatprep.subr.bf16.mxu0 0
    %450 = vmatpush1.bf16.msra.mxu0 %v362
    %451 = vmatprep.subr.bf16.mxu0 0
    %452 = vmatpush2.bf16.msra.mxu0 0
    %453 = vmatprep.subr.bf16.mxu0 0
    %454 = vmatpush2.bf16.msra.mxu0 0
    %455 = vmatprep.subr.bf16.mxu0 0
    %456 = vmatpush2.bf16.msra.mxu0 0
    %457 = vmatprep.subr.bf16.mxu0 0
    %458 = vmatpush2.bf16.msra.mxu0 0
    %459 = vmatprep.subr.bf16.mxu0 0
    %460 = vmatpush2.bf16.msra.mxu0 0
    %461 = vmatprep.subr.bf16.mxu0 0
    %462 = vmatpush2.bf16.msra.mxu0 0
    %463 = vmatprep.subr.bf16.mxu0 0
    %464 = vmatpush2.bf16.msra.mxu0 0
    %465 = vmatprep.subr.bf16.mxu0 0
    %466 = vmatpush2.bf16.msra.mxu0 0
    %467 = vmatprep.mubr.bf16.mxu0 0
    %468 = vmatmul.mubr.bf16.gmra.mxu0 %v246
    %v469 = vpop.f32.mrf.mxu0
    %v470 = vadd.f32 %v429, %v469
    %v471 = vpop.f32.mrf.mxu0
    %v472 = vpop.f32.mrf.mxu0
    %v473 = vadd.f32 %v432, %v472
    %v474 = vpop.f32.mrf.mxu0
    %475 = vdwg.mxu0
    %v476 = vmax.f32 %v470, 0.0
    %v477 = vmax.f32 %v473, 0.0
    %v478 = vpack.c.bf16 %v477, %v476
    %v480 = vunpack.c.l.b16 %v478
    %v481 = vunpack.c.h.b16 %v478
    %v482 = vpack.c.b16 %v480, %v480
    %v483 = vpack.c.b16 %v481, %v481
    %486 = vst [vmem:[#allocation3] sm:$0xf] %v482
    %487 = vst [vmem:[#allocation3 + $0xc] sm:$0xf] %v483
    %488 = vmatprep.subr.bf16.mxu0 0
    %489 = vmatpush1.bf16.msra.mxu0 0
    %490 = vmatprep.subr.bf16.mxu0 0
    %491 = vmatpush1.bf16.msra.mxu0 0
    %492 = vmatprep.subr.bf16.mxu0 0
    %493 = vmatpush1.bf16.msra.mxu0 0
    %494 = vmatprep.subr.bf16.mxu0 0
    %495 = vmatpush1.bf16.msra.mxu0 0
    %496 = vmatprep.subr.bf16.mxu0 0
    %497 = vmatpush1.bf16.msra.mxu0 0
    %498 = vmatprep.subr.bf16.mxu0 0
    %499 = vmatpush1.bf16.msra.mxu0 0
    %500 = vmatprep.subr.bf16.mxu0 0
    %501 = vmatpush1.bf16.msra.mxu0 0
    %502 = vmatprep.subr.bf16.mxu0 0
    %503 = vmatpush1.bf16.msra.mxu0 %v478
    %504 = vmatprep.subr.bf16.mxu0 0
    %505 = vmatpush2.bf16.msra.mxu0 0
    %506 = vmatprep.subr.bf16.mxu0 0
    %507 = vmatpush2.bf16.msra.mxu0 0
    %508 = vmatprep.subr.bf16.mxu0 0
    %509 = vmatpush2.bf16.msra.mxu0 0
    %510 = vmatprep.subr.bf16.mxu0 0
    %511 = vmatpush2.bf16.msra.mxu0 0
    %512 = vmatprep.subr.bf16.mxu0 0
    %513 = vmatpush2.bf16.msra.mxu0 0
    %514 = vmatprep.subr.bf16.mxu0 0
    %515 = vmatpush2.bf16.msra.mxu0 0
    %516 = vmatprep.subr.bf16.mxu0 0
    %517 = vmatpush2.bf16.msra.mxu0 0
    %518 = vmatprep.subr.bf16.mxu0 0
    %519 = vmatpush2.bf16.msra.mxu0 0
    %520 = vmatprep.mubr.bf16.mxu0 0
    %521 = vmatmul.mubr.bf16.gmra.mxu0 %v67
    %v522 = vpop.f32.mrf.mxu0
    %v523 = vadd.f32 0.0, %v522
    %v524 = vpop.f32.mrf.mxu0
    %v525 = vpop.f32.mrf.mxu0
    %v526 = vadd.f32 0.0, %v525
    %v527 = vpop.f32.mrf.mxu0
    %528 = vdwg.mxu0
    %v529 = vpack.c.bf16 %v526, %v523
    %v531 = vunpack.c.l.b16 %v529
    %v532 = vunpack.c.h.b16 %v529
    %v533 = vpack.c.b16 %v531, %v531
    %v534 = vpack.c.b16 %v532, %v532
    %537 = vst [vmem:[#allocation3 + $0x4] sm:$0xf] %v533
    %538 = vst [vmem:[#allocation3 + $0x10] sm:$0xf] %v534
    %539 = vmatprep.subr.bf16.mxu0 0
    %540 = vmatpush1.bf16.msra.mxu0 0
    %541 = vmatprep.subr.bf16.mxu0 0
    %542 = vmatpush1.bf16.msra.mxu0 0
    %543 = vmatprep.subr.bf16.mxu0 0
    %544 = vmatpush1.bf16.msra.mxu0 0
    %545 = vmatprep.subr.bf16.mxu0 0
    %546 = vmatpush1.bf16.msra.mxu0 0
    %547 = vmatprep.subr.bf16.mxu0 0
    %548 = vmatpush1.bf16.msra.mxu0 0
    %549 = vmatprep.subr.bf16.mxu0 0
    %550 = vmatpush1.bf16.msra.mxu0 0
    %551 = vmatprep.subr.bf16.mxu0 0
    %552 = vmatpush1.bf16.msra.mxu0 0
    %553 = vmatprep.subr.bf16.mxu0 0
    %554 = vmatpush1.bf16.msra.mxu0 %v529
    %555 = vmatprep.subr.bf16.mxu0 0
    %556 = vmatpush2.bf16.msra.mxu0 0
    %557 = vmatprep.subr.bf16.mxu0 0
    %558 = vmatpush2.bf16.msra.mxu0 0
    %559 = vmatprep.subr.bf16.mxu0 0
    %560 = vmatpush2.bf16.msra.mxu0 0
    %561 = vmatprep.subr.bf16.mxu0 0
    %562 = vmatpush2.bf16.msra.mxu0 0
    %563 = vmatprep.subr.bf16.mxu0 0
    %564 = vmatpush2.bf16.msra.mxu0 0
    %565 = vmatprep.subr.bf16.mxu0 0
    %566 = vmatpush2.bf16.msra.mxu0 0
    %567 = vmatprep.subr.bf16.mxu0 0
    %568 = vmatpush2.bf16.msra.mxu0 0
    %569 = vmatprep.subr.bf16.mxu0 0
    %570 = vmatpush2.bf16.msra.mxu0 0
    %571 = vmatprep.mubr.bf16.mxu0 0
    %572 = vmatmul.mubr.bf16.gmra.mxu0 %v67
    %v573 = vpop.f32.mrf.mxu0
    %v574 = vadd.f32 0.0, %v573
    %v575 = vpop.f32.mrf.mxu0
    %v576 = vpop.f32.mrf.mxu0
    %v577 = vadd.f32 0.0, %v576
    %v578 = vpop.f32.mrf.mxu0
    %579 = vdwg.mxu0
    %v580 = vmul.f32 %v574, 2.0
    %v581 = vmul.f32 %v577, 2.0
    %v582 = vsub.f32 %v580, %v476
    %v583 = vsub.f32 %v581, %v477
    %v584 = vpack.c.bf16 %v583, %v582
    %v586 = vunpack.c.l.b16 %v584
    %v587 = vunpack.c.h.b16 %v584
    %v588 = vpack.c.b16 %v586, %v586
    %v589 = vpack.c.b16 %v587, %v587
    %592 = vst [vmem:[#allocation3 + $0x8] sm:$0xf] %v588
    %593 = vst [vmem:[#allocation3 + $0x14] sm:$0xf] %v589
    %v594 = vld [vmem:[#allocation3] sm:$0xff]
    %v595 = vld [vmem:[#allocation3 + $0x8] sm:$0xf]
    %v596 = vld [vmem:[#allocation3 + $0xc] sm:$0xff]
    %v597 = vld [vmem:[#allocation3 + $0x14] sm:$0xf]
    %v598 = vld [vmem:[%s5] sm:$0xf]
    %v599 = vld [vmem:[%s5 + $0x4] sm:$0xf]
    %v600 = vld [vmem:[%s5 + $0x8] sm:$0xf]
    %v601 = vld [vmem:[%s5 + $0xc] sm:$0xf]
    %v602 = vld [vmem:[%s5 + $0x10] sm:$0xf]
    %v603 = vld [vmem:[%s5 + $0x14] sm:$0xf]
    %v604 = vld [vmem:[%s5 + $0x18] sm:$0xf]
    %v605 = vld [vmem:[%s5 + $0x1c] sm:$0xf]
    %v606 = vld [vmem:[%s5 + $0x20] sm:$0xf]
    %v607 = vld [vmem:[%s5 + $0x24] sm:$0xf]
    %v608 = vld [vmem:[%s5 + $0x28] sm:$0xf]
    %v609 = vld [vmem:[%s5 + $0x2c] sm:$0xf]
    %v610 = vld [vmem:[%s5 + $0x30] sm:$0xf]
    %v611 = vld [vmem:[%s5 + $0x34] sm:$0xf]
    %v612 = vld [vmem:[%s5 + $0x38] sm:$0xf]
    %v613 = vld [vmem:[%s5 + $0x3c] sm:$0xf]
    %v614 = vld [vmem:[%s5 + $0x40] sm:$0xf]
    %v615 = vld [vmem:[%s5 + $0x44] sm:$0xf]
    %v616 = vld [vmem:[%s5 + $0x48] sm:$0xf]
    %v617 = vld [vmem:[%s5 + $0x4c] sm:$0xf]
    %v618 = vld [vmem:[%s5 + $0x50] sm:$0xf]
    %v619 = vld [vmem:[%s5 + $0x54] sm:$0xf]
    %v620 = vld [vmem:[%s5 + $0x58] sm:$0xf]
    %v621 = vld [vmem:[%s5 + $0x5c] sm:$0xf]
    %v622 = vld [vmem:[%s5 + $0x60] sm:$0xf]
    %v623 = vld [vmem:[%s5 + $0x64] sm:$0xf]
    %v624 = vld [vmem:[%s5 + $0x68] sm:$0xf]
    %v625 = vld [vmem:[%s5 + $0x6c] sm:$0xf]
    %v626 = vld [vmem:[%s5 + $0x70] sm:$0xf]
    %v627 = vld [vmem:[%s5 + $0x74] sm:$0xf]
    %v628 = vld [vmem:[%s5 + $0x78] sm:$0xf]
    %v629 = vld [vmem:[%s5 + $0x7c] sm:$0xf]
    %v630 = vld [vmem:[%s5 + $0x80] sm:$0xf]
    %v631 = vld [vmem:[%s5 + $0x84] sm:$0xf]
    %v632 = vld [vmem:[%s5 + $0x88] sm:$0xf]
    %v633 = vld [vmem:[%s5 + $0x8c] sm:$0xf]
    %v634 = vld [vmem:[%s5 + $0x90] sm:$0xf]
    %v635 = vld [vmem:[%s5 + $0x94] sm:$0xf]
    %v636 = vld [vmem:[%s5 + $0x98] sm:$0xf]
    %v637 = vld [vmem:[%s5 + $0x9c] sm:$0xf]
    %v638 = vld [vmem:[%s5 + $0xa0] sm:$0xf]
    %v639 = vld [vmem:[%s5 + $0xa4] sm:$0xf]
    %v640 = vld [vmem:[%s5 + $0xa8] sm:$0xf]
    %v641 = vld [vmem:[%s5 + $0xac] sm:$0xf]
    %v642 = vld [vmem:[%s5 + $0xb0] sm:$0xf]
    %v643 = vld [vmem:[%s5 + $0xb4] sm:$0xf]
    %v644 = vld [vmem:[%s5 + $0xb8] sm:$0xf]
    %v645 = vld [vmem:[%s5 + $0xbc] sm:$0xf]
    %v646 = vld [vmem:[%s6] sm:$0x1]
    %v648 = vlaneseq
    %v649 = vshrl.u32 %v648, 7
    %v650 = vsub.s32 0, %v649
    %v651 = vrot.slane %v646, %v650
    %v657 = vunpack.c.l.b16 %v594
    %v658 = vunpack.c.h.b16 %v594
    %v659 = vunpack.c.l.b16 %v595
    %v660 = vunpack.c.l.b16 %v596
    %v661 = vunpack.c.h.b16 %v596
    %v662 = vunpack.c.l.b16 %v597
    %v663 = vpack.c.b16 %v660, %v657
    %v664 = vpack.c.b16 %v661, %v658
    %v665 = vpack.c.b16 %v662, %v659
    %v717 = vunpack.c.l.b16 %v598
    %v718 = vunpack.c.l.b16 %v599
    %v719 = vunpack.c.l.b16 %v600
    %v720 = vunpack.c.l.b16 %v601
    %v721 = vunpack.c.l.b16 %v602
    %v722 = vunpack.c.l.b16 %v603
    %v723 = vunpack.c.l.b16 %v604
    %v724 = vunpack.c.l.b16 %v605
    %v725 = vunpack.c.l.b16 %v606
    %v726 = vunpack.c.l.b16 %v607
    %v727 = vunpack.c.l.b16 %v608
    %v728 = vunpack.c.l.b16 %v609
    %v729 = vunpack.c.l.b16 %v610
    %v730 = vunpack.c.l.b16 %v611
    %v731 = vunpack.c.l.b16 %v612
    %v732 = vunpack.c.l.b16 %v613
    %v733 = vunpack.c.l.b16 %v614
    %v734 = vunpack.c.l.b16 %v615
    %v735 = vunpack.c.l.b16 %v616
    %v736 = vunpack.c.l.b16 %v617
    %v737 = vunpack.c.l.b16 %v618
    %v738 = vunpack.c.l.b16 %v619
    %v739 = vunpack.c.l.b16 %v620
    %v740 = vunpack.c.l.b16 %v621
    %v741 = vunpack.c.l.b16 %v622
    %v742 = vunpack.c.l.b16 %v623
    %v743 = vunpack.c.l.b16 %v624
    %v744 = vunpack.c.l.b16 %v625
    %v745 = vunpack.c.l.b16 %v626
    %v746 = vunpack.c.l.b16 %v627
    %v747 = vunpack.c.l.b16 %v628
    %v748 = vunpack.c.l.b16 %v629
    %v749 = vunpack.c.l.b16 %v630
    %v750 = vunpack.c.l.b16 %v631
    %v751 = vunpack.c.l.b16 %v632
    %v752 = vunpack.c.l.b16 %v633
    %v753 = vunpack.c.l.b16 %v634
    %v754 = vunpack.c.l.b16 %v635
    %v755 = vunpack.c.l.b16 %v636
    %v756 = vunpack.c.l.b16 %v637
    %v757 = vunpack.c.l.b16 %v638
    %v758 = vunpack.c.l.b16 %v639
    %v759 = vunpack.c.l.b16 %v640
    %v760 = vunpack.c.l.b16 %v641
    %v761 = vunpack.c.l.b16 %v642
    %v762 = vunpack.c.l.b16 %v643
    %v763 = vunpack.c.l.b16 %v644
    %v764 = vunpack.c.l.b16 %v645
    %v765 = vpack.c.b16 %v718, %v717
    %v766 = vpack.c.b16 %v720, %v719
    %v767 = vpack.c.b16 %v722, %v721
    %v768 = vpack.c.b16 %v724, %v723
    %v769 = vpack.c.b16 %v726, %v725
    %v770 = vpack.c.b16 %v728, %v727
    %v771 = vpack.c.b16 %v730, %v729
    %v772 = vpack.c.b16 %v732, %v731
    %v773 = vpack.c.b16 %v734, %v733
    %v774 = vpack.c.b16 %v736, %v735
    %v775 = vpack.c.b16 %v738, %v737
    %v776 = vpack.c.b16 %v740, %v739
    %v777 = vpack.c.b16 %v742, %v741
    %v778 = vpack.c.b16 %v744, %v743
    %v779 = vpack.c.b16 %v746, %v745
    %v780 = vpack.c.b16 %v748, %v747
    %v781 = vpack.c.b16 %v750, %v749
    %v782 = vpack.c.b16 %v752, %v751
    %v783 = vpack.c.b16 %v754, %v753
    %v784 = vpack.c.b16 %v756, %v755
    %v785 = vpack.c.b16 %v758, %v757
    %v786 = vpack.c.b16 %v760, %v759
    %v787 = vpack.c.b16 %v762, %v761
    %v788 = vpack.c.b16 %v764, %v763
    %813 = vmatprep.subr.bf16.mxu0 0
    %814 = vmatpush1.bf16.msra.mxu0 %v772
    %815 = vmatprep.subr.bf16.mxu0 0
    %816 = vmatpush1.bf16.msra.mxu0 %v771
    %817 = vmatprep.subr.bf16.mxu0 0
    %818 = vmatpush1.bf16.msra.mxu0 %v770
    %819 = vmatprep.subr.bf16.mxu0 0
    %820 = vmatpush1.bf16.msra.mxu0 %v769
    %821 = vmatprep.subr.bf16.mxu0 0
    %822 = vmatpush1.bf16.msra.mxu0 %v768
    %823 = vmatprep.subr.bf16.mxu0 0
    %824 = vmatpush1.bf16.msra.mxu0 %v767
    %825 = vmatprep.subr.bf16.mxu0 0
    %826 = vmatpush1.bf16.msra.mxu0 %v766
    %827 = vmatprep.subr.bf16.mxu0 0
    %828 = vmatpush1.bf16.msra.mxu0 %v765
    %829 = vmatprep.subr.bf16.mxu0 0
    %830 = vmatpush2.bf16.msra.mxu0 %v780
    %831 = vmatprep.subr.bf16.mxu0 0
    %832 = vmatpush2.bf16.msra.mxu0 %v779
    %833 = vmatprep.subr.bf16.mxu0 0
    %834 = vmatpush2.bf16.msra.mxu0 %v778
    %835 = vmatprep.subr.bf16.mxu0 0
    %836 = vmatpush2.bf16.msra.mxu0 %v777
    %837 = vmatprep.subr.bf16.mxu0 0
    %838 = vmatpush2.bf16.msra.mxu0 %v776
    %839 = vmatprep.subr.bf16.mxu0 0
    %840 = vmatpush2.bf16.msra.mxu0 %v775
    %841 = vmatprep.subr.bf16.mxu0 0
    %842 = vmatpush2.bf16.msra.mxu0 %v774
    %843 = vmatprep.subr.bf16.mxu0 0
    %844 = vmatpush2.bf16.msra.mxu0 %v773
    %845 = vmatprep.mubr.bf16.mxu0 %v664
    %846 = vmatmul.mubr.bf16.gmra.mxu0 %v663
    %v847 = vpop.f32.mrf.mxu0
    %v848 = vadd.f32 %v651, %v847
    %v849 = vpop.f32.mrf.mxu0
    %v850 = vpop.f32.mrf.mxu0
    %v851 = vadd.f32 %v651, %v850
    %v852 = vpop.f32.mrf.mxu0
    %853 = vdwg.mxu0
    %854 = vmatprep.subr.bf16.mxu0 0
    %855 = vmatpush1.bf16.msra.mxu0 %v788
    %856 = vmatprep.subr.bf16.mxu0 0
    %857 = vmatpush1.bf16.msra.mxu0 %v787
    %858 = vmatprep.subr.bf16.mxu0 0
    %859 = vmatpush1.bf16.msra.mxu0 %v786
    %860 = vmatprep.subr.bf16.mxu0 0
    %861 = vmatpush1.bf16.msra.mxu0 %v785
    %862 = vmatprep.subr.bf16.mxu0 0
    %863 = vmatpush1.bf16.msra.mxu0 %v784
    %864 = vmatprep.subr.bf16.mxu0 0
    %865 = vmatpush1.bf16.msra.mxu0 %v783
    %866 = vmatprep.subr.bf16.mxu0 0
    %867 = vmatpush1.bf16.msra.mxu0 %v782
    %868 = vmatprep.subr.bf16.mxu0 0
    %869 = vmatpush1.bf16.msra.mxu0 %v781
    %870 = vmatprep.subr.bf16.mxu0 0
    %871 = vmatpush2.bf16.msra.mxu0 0
    %872 = vmatprep.subr.bf16.mxu0 0
    %873 = vmatpush2.bf16.msra.mxu0 0
    %874 = vmatprep.subr.bf16.mxu0 0
    %875 = vmatpush2.bf16.msra.mxu0 0
    %876 = vmatprep.subr.bf16.mxu0 0
    %877 = vmatpush2.bf16.msra.mxu0 0
    %878 = vmatprep.subr.bf16.mxu0 0
    %879 = vmatpush2.bf16.msra.mxu0 0
    %880 = vmatprep.subr.bf16.mxu0 0
    %881 = vmatpush2.bf16.msra.mxu0 0
    %882 = vmatprep.subr.bf16.mxu0 0
    %883 = vmatpush2.bf16.msra.mxu0 0
    %884 = vmatprep.subr.bf16.mxu0 0
    %885 = vmatpush2.bf16.msra.mxu0 0
    %886 = vmatprep.mubr.bf16.mxu0 0
    %887 = vmatmul.mubr.bf16.gmra.mxu0 %v665
    %v888 = vpop.f32.mrf.mxu0
    %v889 = vadd.f32 %v848, %v888
    %v890 = vpop.f32.mrf.mxu0
    %v891 = vpop.f32.mrf.mxu0
    %v892 = vadd.f32 %v851, %v891
    %v893 = vpop.f32.mrf.mxu0
    %894 = vdwg.mxu0
    %v895 = vmax.f32 %v889, 0.0
    %v896 = vmax.f32 %v892, 0.0
    %897 = vst [vmem:[#allocation4] sm:$0xff] %v895
    %898 = vst [vmem:[#allocation4 + $0x8] sm:$0xff] %v896
    %899 = vst [vmem:[#allocation5] sm:$0xff] 0.0
    %900 = vst [vmem:[#allocation5 + $0x8] sm:$0xff] 0.0
    %s901 = sld [smem:[#allocation6]]
    %s902 = sld [smem:[#allocation6 + $0x1]]
    %s903 = scalar_lea.vmem [#allocation4], %s901
    %v904 = vld [vmem:[%s903] sm:$0x1]
    %905 = vst [vmem:[#allocation5] sm:$0x1] %v904
    %s906 = scalar_lea.vmem [#allocation4], %s902
    %v907 = vld [vmem:[%s906] sm:$0x1]
    %908 = vst [vmem:[#allocation5 + $0x8] sm:$0x1] %v907
    %s909 = sld [smem:[#allocation6 + $0x80]]
    %s910 = sld [smem:[#allocation6 + $0x81]]
    %s911 = scalar_lea.vmem [#allocation4], %s909
    %v912 = vld [vmem:[%s911] sm:$0x1]
    %913 = vst [vmem:[#allocation5 + $0x1] sm:$0x1] %v912
    %s914 = scalar_lea.vmem [#allocation4], %s910
    %v915 = vld [vmem:[%s914] sm:$0x1]
    %916 = vst [vmem:[#allocation5 + $0x9] sm:$0x1] %v915
    %s917 = sld [smem:[#allocation6 + $0x100]]
    %s918 = sld [smem:[#allocation6 + $0x101]]
    %s919 = scalar_lea.vmem [#allocation4], %s917
    %v920 = vld [vmem:[%s919] sm:$0x1]
    %921 = vst [vmem:[#allocation5 + $0x2] sm:$0x1] %v920
    %s922 = scalar_lea.vmem [#allocation4], %s918
    %v923 = vld [vmem:[%s922] sm:$0x1]
    %924 = vst [vmem:[#allocation5 + $0xa] sm:$0x1] %v923
    %s925 = sld [smem:[#allocation6 + $0x180]]
    %s926 = sld [smem:[#allocation6 + $0x181]]
    %s927 = scalar_lea.vmem [#allocation4], %s925
    %v928 = vld [vmem:[%s927] sm:$0x1]
    %929 = vst [vmem:[#allocation5 + $0x3] sm:$0x1] %v928
    %s930 = scalar_lea.vmem [#allocation4], %s926
    %v931 = vld [vmem:[%s930] sm:$0x1]
    %932 = vst [vmem:[#allocation5 + $0xb] sm:$0x1] %v931
    %s933 = sld [smem:[#allocation6 + $0x200]]
    %s934 = sld [smem:[#allocation6 + $0x201]]
    %s935 = scalar_lea.vmem [#allocation4], %s933
    %v936 = vld [vmem:[%s935] sm:$0x1]
    %937 = vst [vmem:[#allocation5 + $0x4] sm:$0x1] %v936
    %s938 = scalar_lea.vmem [#allocation4], %s934
    %v939 = vld [vmem:[%s938] sm:$0x1]
    %940 = vst [vmem:[#allocation5 + $0xc] sm:$0x1] %v939
    %s941 = sld [smem:[#allocation6 + $0x280]]
    %s942 = sld [smem:[#allocation6 + $0x281]]
    %s943 = scalar_lea.vmem [#allocation4], %s941
    %v944 = vld [vmem:[%s943] sm:$0x1]
    %945 = vst [vmem:[#allocation5 + $0x5] sm:$0x1] %v944
    %s946 = scalar_lea.vmem [#allocation4], %s942
    %v947 = vld [vmem:[%s946] sm:$0x1]
    %948 = vst [vmem:[#allocation5 + $0xd] sm:$0x1] %v947
    %s949 = sld [smem:[#allocation6 + $0x300]]
    %s950 = sld [smem:[#allocation6 + $0x301]]
    %s951 = scalar_lea.vmem [#allocation4], %s949
    %v952 = vld [vmem:[%s951] sm:$0x1]
    %953 = vst [vmem:[#allocation5 + $0x6] sm:$0x1] %v952
    %s954 = scalar_lea.vmem [#allocation4], %s950
    %v955 = vld [vmem:[%s954] sm:$0x1]
    %956 = vst [vmem:[#allocation5 + $0xe] sm:$0x1] %v955
    %s957 = sld [smem:[#allocation6 + $0x380]]
    %s958 = sld [smem:[#allocation6 + $0x381]]
    %s959 = scalar_lea.vmem [#allocation4], %s957
    %v960 = vld [vmem:[%s959] sm:$0x1]
    %961 = vst [vmem:[#allocation5 + $0x7] sm:$0x1] %v960
    %s962 = scalar_lea.vmem [#allocation4], %s958
    %v963 = vld [vmem:[%s962] sm:$0x1]
    %964 = vst [vmem:[#allocation5 + $0xf] sm:$0x1] %v963
    %v965 = vld [vmem:[#allocation5] sm:$0xff]
    %v966 = vld [vmem:[#allocation5 + $0x8] sm:$0xff]
    %v967 = vpack.c.bf16 %v965, %v965
    %v968 = vpack.c.bf16 %v966, %v966
    %v969 = vld [vmem:[%s7] sm:$0xf]
    %v970 = vld [vmem:[%s7 + $0x4] sm:$0xf]
    %v971 = vld [vmem:[%s7 + $0x8] sm:$0xf]
    %v972 = vld [vmem:[%s7 + $0xc] sm:$0xf]
    %v973 = vld [vmem:[%s7 + $0x10] sm:$0xf]
    %v974 = vld [vmem:[%s7 + $0x14] sm:$0xf]
    %v975 = vld [vmem:[%s7 + $0x18] sm:$0xf]
    %v976 = vld [vmem:[%s7 + $0x1c] sm:$0xf]
    %v977 = vld [vmem:[%s7 + $0x20] sm:$0xf]
    %v978 = vld [vmem:[%s7 + $0x24] sm:$0xf]
    %v979 = vld [vmem:[%s7 + $0x28] sm:$0xf]
    %v980 = vld [vmem:[%s7 + $0x2c] sm:$0xf]
    %v981 = vld [vmem:[%s7 + $0x30] sm:$0xf]
    %v982 = vld [vmem:[%s7 + $0x34] sm:$0xf]
    %v983 = vld [vmem:[%s7 + $0x38] sm:$0xf]
    %v984 = vld [vmem:[%s7 + $0x3c] sm:$0xf]
    %v985 = vld [vmem:[%s7 + $0x40] sm:$0xf]
    %v986 = vld [vmem:[%s7 + $0x44] sm:$0xf]
    %v987 = vld [vmem:[%s7 + $0x48] sm:$0xf]
    %v988 = vld [vmem:[%s7 + $0x4c] sm:$0xf]
    %v989 = vld [vmem:[%s7 + $0x50] sm:$0xf]
    %v990 = vld [vmem:[%s7 + $0x54] sm:$0xf]
    %v991 = vld [vmem:[%s7 + $0x58] sm:$0xf]
    %v992 = vld [vmem:[%s7 + $0x5c] sm:$0xf]
    %v993 = vld [vmem:[%s7 + $0x60] sm:$0xf]
    %v994 = vld [vmem:[%s7 + $0x64] sm:$0xf]
    %v995 = vld [vmem:[%s7 + $0x68] sm:$0xf]
    %v996 = vld [vmem:[%s7 + $0x6c] sm:$0xf]
    %v997 = vld [vmem:[%s7 + $0x70] sm:$0xf]
    %v998 = vld [vmem:[%s7 + $0x74] sm:$0xf]
    %v999 = vld [vmem:[%s7 + $0x78] sm:$0xf]
    %v1000 = vld [vmem:[%s7 + $0x7c] sm:$0xf]
    %v1001 = vld [vmem:[%s8] sm:$0x1]
    %v1003 = vlaneseq
    %v1004 = vshrl.u32 %v1003, 7
    %v1005 = vsub.s32 0, %v1004
    %v1006 = vrot.slane %v1001, %v1005
    %v1040 = vunpack.c.l.b16 %v969
    %v1041 = vunpack.c.l.b16 %v970
    %v1042 = vunpack.c.l.b16 %v971
    %v1043 = vunpack.c.l.b16 %v972
    %v1044 = vunpack.c.l.b16 %v973
    %v1045 = vunpack.c.l.b16 %v974
    %v1046 = vunpack.c.l.b16 %v975
    %v1047 = vunpack.c.l.b16 %v976
    %v1048 = vunpack.c.l.b16 %v977
    %v1049 = vunpack.c.l.b16 %v978
    %v1050 = vunpack.c.l.b16 %v979
    %v1051 = vunpack.c.l.b16 %v980
    %v1052 = vunpack.c.l.b16 %v981
    %v1053 = vunpack.c.l.b16 %v982
    %v1054 = vunpack.c.l.b16 %v983
    %v1055 = vunpack.c.l.b16 %v984
    %v1056 = vunpack.c.l.b16 %v985
    %v1057 = vunpack.c.l.b16 %v986
    %v1058 = vunpack.c.l.b16 %v987
    %v1059 = vunpack.c.l.b16 %v988
    %v1060 = vunpack.c.l.b16 %v989
    %v1061 = vunpack.c.l.b16 %v990
    %v1062 = vunpack.c.l.b16 %v991
    %v1063 = vunpack.c.l.b16 %v992
    %v1064 = vunpack.c.l.b16 %v993
    %v1065 = vunpack.c.l.b16 %v994
    %v1066 = vunpack.c.l.b16 %v995
    %v1067 = vunpack.c.l.b16 %v996
    %v1068 = vunpack.c.l.b16 %v997
    %v1069 = vunpack.c.l.b16 %v998
    %v1070 = vunpack.c.l.b16 %v999
    %v1071 = vunpack.c.l.b16 %v1000
    %v1072 = vpack.c.b16 %v1041, %v1040
    %v1073 = vpack.c.b16 %v1043, %v1042
    %v1074 = vpack.c.b16 %v1045, %v1044
    %v1075 = vpack.c.b16 %v1047, %v1046
    %v1076 = vpack.c.b16 %v1049, %v1048
    %v1077 = vpack.c.b16 %v1051, %v1050
    %v1078 = vpack.c.b16 %v1053, %v1052
    %v1079 = vpack.c.b16 %v1055, %v1054
    %v1080 = vpack.c.b16 %v1057, %v1056
    %v1081 = vpack.c.b16 %v1059, %v1058
    %v1082 = vpack.c.b16 %v1061, %v1060
    %v1083 = vpack.c.b16 %v1063, %v1062
    %v1084 = vpack.c.b16 %v1065, %v1064
    %v1085 = vpack.c.b16 %v1067, %v1066
    %v1086 = vpack.c.b16 %v1069, %v1068
    %v1087 = vpack.c.b16 %v1071, %v1070
    %1104 = vmatprep.subr.bf16.mxu0 0
    %1105 = vmatpush1.bf16.msra.mxu0 %v1079
    %1106 = vmatprep.subr.bf16.mxu0 0
    %1107 = vmatpush1.bf16.msra.mxu0 %v1078
    %1108 = vmatprep.subr.bf16.mxu0 0
    %1109 = vmatpush1.bf16.msra.mxu0 %v1077
    %1110 = vmatprep.subr.bf16.mxu0 0
    %1111 = vmatpush1.bf16.msra.mxu0 %v1076
    %1112 = vmatprep.subr.bf16.mxu0 0
    %1113 = vmatpush1.bf16.msra.mxu0 %v1075
    %1114 = vmatprep.subr.bf16.mxu0 0
    %1115 = vmatpush1.bf16.msra.mxu0 %v1074
    %1116 = vmatprep.subr.bf16.mxu0 0
    %1117 = vmatpush1.bf16.msra.mxu0 %v1073
    %1118 = vmatprep.subr.bf16.mxu0 0
    %1119 = vmatpush1.bf16.msra.mxu0 %v1072
    %1120 = vmatprep.subr.bf16.mxu0 0
    %1121 = vmatpush2.bf16.msra.mxu0 %v1087
    %1122 = vmatprep.subr.bf16.mxu0 0
    %1123 = vmatpush2.bf16.msra.mxu0 %v1086
    %1124 = vmatprep.subr.bf16.mxu0 0
    %1125 = vmatpush2.bf16.msra.mxu0 %v1085
    %1126 = vmatprep.subr.bf16.mxu0 0
    %1127 = vmatpush2.bf16.msra.mxu0 %v1084
    %1128 = vmatprep.subr.bf16.mxu0 0
    %1129 = vmatpush2.bf16.msra.mxu0 %v1083
    %1130 = vmatprep.subr.bf16.mxu0 0
    %1131 = vmatpush2.bf16.msra.mxu0 %v1082
    %1132 = vmatprep.subr.bf16.mxu0 0
    %1133 = vmatpush2.bf16.msra.mxu0 %v1081
    %1134 = vmatprep.subr.bf16.mxu0 0
    %1135 = vmatpush2.bf16.msra.mxu0 %v1080
    %1136 = vmatprep.mubr.bf16.mxu0 %v968
    %1137 = vmatmul.mubr.bf16.gmra.mxu0 %v967
    %v1138 = vpop.f32.mrf.mxu0
    %v1139 = vadd.f32 %v1006, %v1138
    %v1140 = vpop.f32.mrf.mxu0
    %v1141 = vpop.f32.mrf.mxu0
    %v1142 = vpop.f32.mrf.mxu0
    %1143 = vdwg.mxu0
    %v1144 = vlaneseq
    %v1145 = vand.u32 %v1144, 127
    %vm1146 = vcmp.lt.s32.totalorder %v1145, 4
    %v1147 = vsel %vm1146, %v1139, -1e+30
    %1148 = vmax.xlane.f32.xlu0 %v1147
    %v1149 = vpop.xlane.xlu0 %1148
    %v1150 = vsub.f32 %v1147, %v1149
    %v1151 = vmul.f32 %v1150, 1.442695
    %v1152 = vpow.pop %v1151
    %1153 = vadd.xlane.f32.xlu0 %v1152
    %v1154 = vpop.xlane.xlu0 %1153
    %v1155 = vlog2.pop %v1154
    %v1156 = vmul.f32 %v1155, 0.6931472
    %v1157 = vsub.f32 %v1150, %v1156
    %1158 = vst [vmem:[%s9] sm:$0xff] %v1157
    // Predicated region
    $region42: #{cheb_link_forward.1} parent=1 // pred_check
      _
    $region43: #{cheb_link_forward.1} parent=1 // pred_check_branch
      %1160 = sbr.rel (0) target = $region45
    $region44: #{cheb_link_forward.1} parent=1 // pred_region
      _
    $region45: #{cheb_link_forward.1} parent=1 // pred_fallthru
      _
    // Predicated region
    $region46: #{cheb_link_forward.1} parent=1 // pred_check
      _
    $region47: #{cheb_link_forward.1} parent=1 // pred_check_branch
      %1162 = sbr.rel (0) target = $region49
    $region48: #{cheb_link_forward.1} parent=1 // pred_region
      _
    $region49: #{cheb_link_forward.1} parent=1 // pred_fallthru
      _
    %1163 = vsyncpa [#allocation7], 1

</llo_original>
